<compile_context>
chip_gen: v7x
topology: tpu7x:2x2x1
jax: 0.10.0
libtpu: 0.0.40
codegen_flags: <defaults>
</compile_context>

<pallas_src>
import math

import jax
import jax.numpy as jnp
from jax.experimental import pallas as pl
from jax.experimental.pallas import tpu as pltpu


def att_kernel(v_ref, k_ref, q_ref, w3_ref, b3_ref, wm_ref, bm_ref, o_ref):
    # o_ref block: (bpb, S, H) -- bpb batches handled by this grid step.
    bpb, S, H = o_ref.shape

    def proj(x_ref, g):
        # Fold batch into the matmul M dimension: (bpb*S, H) @ (H, H).
        x = x_ref[...].reshape(bpb * S, H)
        y = jnp.dot(x, w3_ref[g], preferred_element_type=jnp.float32) + b3_ref[g]
        return y.reshape(bpb, S, H)

    vp = proj(v_ref, 0)          # (bpb, S, H)
    kp = proj(k_ref, 1)          # (bpb, S, H)
    qp = proj(q_ref, 2)          # (bpb, S, H), pre-scaled by 1/sqrt(H) (folded into Wq/bq)

    # scores = q' k'^T : batched dot_general contracting over H (no explicit transpose).
    scores = jnp.einsum('bsh,bth->bst', qp, kp,
                        preferred_element_type=jnp.float32)       # (bpb, S, S)

    # softmax over the last axis (max-subtracted). Full-precision reciprocal keeps the
    # 1e-4 parity budget; only bpb*S reciprocals total, so it is not a perf factor.
    m = jnp.max(scores, axis=-1, keepdims=True)
    e = jnp.exp(scores - m)
    s = jnp.sum(e, axis=-1, keepdims=True)
    att_map = e * pl.reciprocal(s, approx=False)                  # (bpb, S, S)
    # TODO(synk): dropout on att_map omitted (inference-mode identity).

    atted = jnp.einsum('bst,bth->bsh', att_map, vp,
                       preferred_element_type=jnp.float32)        # (bpb, S, H)

    # Merge projection: fold batch into M again for a single lane-dense matmul.
    out = jnp.dot(atted.reshape(bpb * S, H), wm_ref[...],
                  preferred_element_type=jnp.float32) + bm_ref[...]
    o_ref[...] = out.reshape(bpb, S, H).astype(o_ref.dtype)


# ---------------------------------------------------------------------------
# Wrapper-side helpers
# ---------------------------------------------------------------------------

def _num_tensorcores_per_chip():
    """TensorCores per chip (2 on v7x, 1 on v5e/v6e). Conservative fallback: 1."""
    try:
        info = pltpu.get_tpu_info()
    except Exception:
        return 1
    for attr in ("num_cores", "core_count", "num_tensorcores",
                 "tensorcore_count", "cores_per_chip"):
        n = getattr(info, attr, None)
        if isinstance(n, int) and n >= 1:
            return int(n)
    return 1


_BLOCK_VMEM_BUDGET = 10 << 20   # per-grid-step activation budget (bytes), << 32 MiB scoped
_MXU_M_TARGET = 256             # keep bpb*S >= this where possible (MXU M fill)


def _block_bytes(bpb, S, H):
    # f32 footprint of one grid step: double-buffered v/k/q in + out, projected v'/k'/q',
    # atted, scores + exp intermediates, single-buffered weights/biases.
    return 4 * (bpb * S * (12 * H + 2 * S) + 4 * H * H + 8 * H)


def _choose_nblk(B, S, H, num_tcs):
    divisors = [d for d in range(1, B + 1) if B % d == 0]
    fitting = [d for d in divisors if _block_bytes(B // d, S, H) <= _BLOCK_VMEM_BUDGET]
    if not fitting:
        # TODO(synk): even bpb=1 exceeds the budget -> needs flash-style S tiling.
        fitting = [B]

    def pick(cands):
        good = [d for d in cands if (B // d) * S >= _MXU_M_TARGET]
        # Prefer the largest nblk that still fills the MXU M dimension (more grid steps ->
        # DMA/compute overlap); otherwise the smallest nblk (largest M, fewest steps).
        return max(good) if good else min(cands)

    nblk = pick(fitting)
    if num_tcs > 1 and B % num_tcs == 0 and nblk % num_tcs != 0:
        # Shard the "parallel" batch-chunk axis evenly across TensorCores (v7x).
        even = [d for d in fitting if d % num_tcs == 0]
        if even:
            nblk = pick(even)
    return nblk


def att_prepare_params(params):
    """One-time weight preparation (call once at init, NOT per forward call).

    PyTorch nn.Linear weights are (out, in) -> transpose to (in, out); fold the attention
    scale 1/sqrt(H) into Wq/bq ((q @ Wq^T + bq) * s == q @ (Wq^T * s) + bq * s); stack the
    three projection weights/biases so the kernel sees one weight and one bias tensor."""
    H = params["wq"].shape[0]
    scale = 1.0 / math.sqrt(H)
    w3 = jnp.stack([params["wv"].T, params["wk"].T, params["wq"].T * scale], axis=0)
    b3 = jnp.stack([params["bv"], params["bk"], params["bq"] * scale],
                   axis=0).reshape(3, 1, H)
    wm = params["wm"].T
    bm = params["bm"].reshape(1, H)
    return {"w3": w3, "b3": b3, "wm": wm, "bm": bm}


def _att_call(v, k, q, prepped, nblk, single_buffer_weights):
    B, S, H = q.shape
    bpb = B // nblk
    w3, b3, wm, bm = prepped["w3"], prepped["b3"], prepped["wm"], prepped["bm"]

    def w_spec(shape, index_map):
        if single_buffer_weights and nblk > 1:
            # Grid-invariant operands: one VMEM buffer, no per-step re-DMA.
            return pl.BlockSpec(shape, index_map, pipeline_mode=pl.Buffered(1))
        return pl.BlockSpec(shape, index_map)

    act_spec = pl.BlockSpec((bpb, S, H), lambda i: (i, 0, 0))

    flops = 8 * B * S * H * H + 4 * B * S * S * H
    bytes_accessed = 4 * (4 * B * S * H + 4 * H * H + 4 * H)
    cost = pl.CostEstimate(flops=flops, transcendentals=B * S * S,
                           bytes_accessed=bytes_accessed)

    return pl.pallas_call(
        att_kernel,
        out_shape=jax.ShapeDtypeStruct((B, S, H), jnp.float32),
        grid=(nblk,),
        in_specs=[
            act_spec,                                    # v
            act_spec,                                    # k
            act_spec,                                    # q
            w_spec((3, H, H), lambda i: (0, 0, 0)),      # stacked Wv/Wk/Wq (pre-transposed)
            w_spec((3, 1, H), lambda i: (0, 0, 0)),      # stacked bv/bk/bq
            w_spec((H, H), lambda i: (0, 0)),            # Wm (pre-transposed)
            w_spec((1, H), lambda i: (0, 0)),            # bm
        ],
        out_specs=pl.BlockSpec((bpb, S, H), lambda i: (i, 0, 0)),
        compiler_params=pltpu.CompilerParams(
            # Batch-chunk axis is independent work -> sharded across TCs on multi-TC chips.
            dimension_semantics=("parallel",),
            # Explicit scoped-VMEM ceiling: per-block budget is <=10 MiB, so 32 MiB leaves
            # headroom on every chip (v7x physical VMEM is 64 MiB per TensorCore).
            vmem_limit_bytes=32 << 20,
        ),
        cost_estimate=cost,
    )(v, k, q, w3, b3, wm, bm)


def att_forward(v, k, q, prepped):
    """v, k, q: (B, S, H) float32. prepped: output of att_prepare_params()."""
    B, S, H = q.shape
    nblk = _choose_nblk(B, S, H, _num_tensorcores_per_chip())
    try:
        return _att_call(v, k, q, prepped, nblk, single_buffer_weights=True)
    except Exception:
        # Fallback for JAX builds that reject pl.Buffered(1) in pallas_call BlockSpecs.
        return _att_call(v, k, q, prepped, nblk, single_buffer_weights=False)


def att_reference(v, k, q, params):
    """Plain-JAX reference matching the PyTorch forward (eval mode)."""
    def lin(x, w, b):
        return x @ w.T + b
    vp = lin(v, params["wv"], params["bv"])
    kp = lin(k, params["wk"], params["bk"])
    qp = lin(q, params["wq"], params["bq"])
    d_k = qp.shape[-1]
    scores = jnp.einsum("bsh,bth->bst", qp, kp) / math.sqrt(d_k)
    att_map = jax.nn.softmax(scores, axis=-1)
    atted = jnp.einsum("bst,bth->bsh", att_map, vp)
    return lin(atted, params["wm"], params["bm"])


if __name__ == "__main__":
    B, S, H = 2, 16, 128   # small shapes: batch=2, seq=16, hidden=128

    key = jax.random.PRNGKey(0)
    keys = jax.random.split(key, 11)

    scale = 1.0 / math.sqrt(H)
    params = {
        "wv": jax.random.uniform(keys[0], (H, H), jnp.float32, -scale, scale),
        "bv": jax.random.uniform(keys[1], (H,), jnp.float32, -scale, scale),
        "wk": jax.random.uniform(keys[2], (H, H), jnp.float32, -scale, scale),
        "bk": jax.random.uniform(keys[3], (H,), jnp.float32, -scale, scale),
        "wq": jax.random.uniform(keys[4], (H, H), jnp.float32, -scale, scale),
        "bq": jax.random.uniform(keys[5], (H,), jnp.float32, -scale, scale),
        "wm": jax.random.uniform(keys[6], (H, H), jnp.float32, -scale, scale),
        "bm": jax.random.uniform(keys[7], (H,), jnp.float32, -scale, scale),
    }

    v = jax.random.normal(keys[8], (B, S, H), jnp.float32)
    k = jax.random.normal(keys[9], (B, S, H), jnp.float32)
    q = jax.random.normal(keys[10], (B, S, H), jnp.float32)

    # One-time weight prep (hoisted out of the per-call path).
    prepped = att_prepare_params(params)

    out = att_forward(v, k, q, prepped)
    out = jax.block_until_ready(out)

    ref = att_reference(v, k, q, params)
    assert out.shape == (B, S, H)
    assert jnp.allclose(out, ref, atol=1e-4, rtol=1e-4), float(jnp.max(jnp.abs(out - ref)))

    print("KERNEL_OK")
</pallas_src>

<mosaic_0001>
module attributes {stable_mosaic.version = 11 : i64} {
  func.func @att_kernel(%arg0: i32, %arg1: memref<2x16x128xf32, #tpu.memory_space<vmem>>, %arg2: memref<2x16x128xf32, #tpu.memory_space<vmem>>, %arg3: memref<2x16x128xf32, #tpu.memory_space<vmem>>, %arg4: memref<3x128x128xf32, #tpu.memory_space<vmem>>, %arg5: memref<3x1x128xf32, #tpu.memory_space<vmem>>, %arg6: memref<128x128xf32, #tpu.memory_space<vmem>>, %arg7: memref<1x128xf32, #tpu.memory_space<vmem>>, %arg8: memref<2x16x128xf32, #tpu.memory_space<vmem>>) attributes {dimension_semantics = [#tpu.dimension_semantics<parallel>], iteration_bounds = array<i64: 1>, scalar_prefetch = 0 : i64, scratch_operands = 0 : i64, tpu.core_type = #tpu.core_type<tc>, window_params = [{transform_indices = @transform_0, window_bounds = array<i64: 2, 16, 128>}, {transform_indices = @transform_1, window_bounds = array<i64: 2, 16, 128>}, {transform_indices = @transform_2, window_bounds = array<i64: 2, 16, 128>}, {pipeline_mode = #tpu.pipeline_mode<synchronous>, transform_indices = @transform_3, window_bounds = array<i64: 3, 128, 128>}, {pipeline_mode = #tpu.pipeline_mode<synchronous>, transform_indices = @transform_4, window_bounds = array<i64: 3, 1, 128>}, {pipeline_mode = #tpu.pipeline_mode<synchronous>, transform_indices = @transform_5, window_bounds = array<i64: 128, 128>}, {pipeline_mode = #tpu.pipeline_mode<synchronous>, transform_indices = @transform_6, window_bounds = array<i64: 1, 128>}, {transform_indices = @transform_7, window_bounds = array<i64: 2, 16, 128>}]} {
    %c0 = arith.constant 0 : index
    %c0_0 = arith.constant 0 : index
    %c0_1 = arith.constant 0 : index
    %0 = vector.load %arg1[%c0, %c0_0, %c0_1] : memref<2x16x128xf32, #tpu.memory_space<vmem>>, vector<2x16x128xf32>
    %1 = vector.shape_cast %0 : vector<2x16x128xf32> to vector<32x128xf32>
    %c0_2 = arith.constant 0 : index
    %c0_3 = arith.constant 0 : index
    %c0_4 = arith.constant 0 : index
    %2 = vector.load %arg4[%c0_2, %c0_3, %c0_4] : memref<3x128x128xf32, #tpu.memory_space<vmem>>, vector<1x128x128xf32>
    %3 = vector.shape_cast %2 : vector<1x128x128xf32> to vector<128x128xf32>
    %cst = arith.constant dense<0.000000e+00> : vector<32x128xf32>
    %4 = tpu.matmul %1, %3, %cst {dimension_numbers = #tpu.dot_dimension_numbers<[1], [0], [0], [1], [0, 0, 1, 1], [], []>} : vector<32x128xf32>, vector<128x128xf32>, vector<32x128xf32> -> vector<32x128xf32>
    %c0_5 = arith.constant 0 : index
    %c0_6 = arith.constant 0 : index
    %c0_7 = arith.constant 0 : index
    %5 = vector.load %arg5[%c0_5, %c0_6, %c0_7] : memref<3x1x128xf32, #tpu.memory_space<vmem>>, vector<1x1x128xf32>
    %6 = vector.shape_cast %5 : vector<1x1x128xf32> to vector<1x128xf32>
    %7 = vector.broadcast %6 : vector<1x128xf32> to vector<32x128xf32>
    %8 = arith.addf %4, %7 : vector<32x128xf32>
    %9 = vector.shape_cast %8 : vector<32x128xf32> to vector<2x16x128xf32>
    %c0_8 = arith.constant 0 : index
    %c0_9 = arith.constant 0 : index
    %c0_10 = arith.constant 0 : index
    %10 = vector.load %arg2[%c0_8, %c0_9, %c0_10] : memref<2x16x128xf32, #tpu.memory_space<vmem>>, vector<2x16x128xf32>
    %11 = vector.shape_cast %10 : vector<2x16x128xf32> to vector<32x128xf32>
    %c1 = arith.constant 1 : index
    %c0_11 = arith.constant 0 : index
    %c0_12 = arith.constant 0 : index
    %12 = vector.load %arg4[%c1, %c0_11, %c0_12] : memref<3x128x128xf32, #tpu.memory_space<vmem>>, vector<1x128x128xf32>
    %13 = vector.shape_cast %12 : vector<1x128x128xf32> to vector<128x128xf32>
    %cst_13 = arith.constant dense<0.000000e+00> : vector<32x128xf32>
    %14 = tpu.matmul %11, %13, %cst_13 {dimension_numbers = #tpu.dot_dimension_numbers<[1], [0], [0], [1], [0, 0, 1, 1], [], []>} : vector<32x128xf32>, vector<128x128xf32>, vector<32x128xf32> -> vector<32x128xf32>
    %c1_14 = arith.constant 1 : index
    %c0_15 = arith.constant 0 : index
    %c0_16 = arith.constant 0 : index
    %15 = vector.load %arg5[%c1_14, %c0_15, %c0_16] : memref<3x1x128xf32, #tpu.memory_space<vmem>>, vector<1x1x128xf32>
    %16 = vector.shape_cast %15 : vector<1x1x128xf32> to vector<1x128xf32>
    %17 = vector.broadcast %16 : vector<1x128xf32> to vector<32x128xf32>
    %18 = arith.addf %14, %17 : vector<32x128xf32>
    %19 = vector.shape_cast %18 : vector<32x128xf32> to vector<2x16x128xf32>
    %c0_17 = arith.constant 0 : index
    %c0_18 = arith.constant 0 : index
    %c0_19 = arith.constant 0 : index
    %20 = vector.load %arg3[%c0_17, %c0_18, %c0_19] : memref<2x16x128xf32, #tpu.memory_space<vmem>>, vector<2x16x128xf32>
    %21 = vector.shape_cast %20 : vector<2x16x128xf32> to vector<32x128xf32>
    %c2 = arith.constant 2 : index
    %c0_20 = arith.constant 0 : index
    %c0_21 = arith.constant 0 : index
    %22 = vector.load %arg4[%c2, %c0_20, %c0_21] : memref<3x128x128xf32, #tpu.memory_space<vmem>>, vector<1x128x128xf32>
    %23 = vector.shape_cast %22 : vector<1x128x128xf32> to vector<128x128xf32>
    %cst_22 = arith.constant dense<0.000000e+00> : vector<32x128xf32>
    %24 = tpu.matmul %21, %23, %cst_22 {dimension_numbers = #tpu.dot_dimension_numbers<[1], [0], [0], [1], [0, 0, 1, 1], [], []>} : vector<32x128xf32>, vector<128x128xf32>, vector<32x128xf32> -> vector<32x128xf32>
    %c2_23 = arith.constant 2 : index
    %c0_24 = arith.constant 0 : index
    %c0_25 = arith.constant 0 : index
    %25 = vector.load %arg5[%c2_23, %c0_24, %c0_25] : memref<3x1x128xf32, #tpu.memory_space<vmem>>, vector<1x1x128xf32>
    %26 = vector.shape_cast %25 : vector<1x1x128xf32> to vector<1x128xf32>
    %27 = vector.broadcast %26 : vector<1x128xf32> to vector<32x128xf32>
    %28 = arith.addf %24, %27 : vector<32x128xf32>
    %29 = vector.shape_cast %28 : vector<32x128xf32> to vector<2x16x128xf32>
    "tpu.trace_start"() <{level = 10 : i32, message = "bsh,bth->bst"}> : () -> ()
    %cst_26 = arith.constant dense<0.000000e+00> : vector<2x16x16xf32>
    %30 = tpu.matmul %29, %19, %cst_26 {dimension_numbers = #tpu.dot_dimension_numbers<[2], [2], [1], [1], [0, 0, 0, 1, 1, 1], [0], [0]>} : vector<2x16x128xf32>, vector<2x16x128xf32>, vector<2x16x16xf32> -> vector<2x16x16xf32>
    "tpu.trace_stop"() : () -> ()
    %cst_27 = arith.constant dense<0xFF800000> : vector<2x16xf32>
    %31 = vector.multi_reduction <maximumf>, %30, %cst_27 [2] : vector<2x16x16xf32> to vector<2x16xf32>
    %32 = vector.shape_cast %31 : vector<2x16xf32> to vector<2x16x1xf32>
    %33 = vector.broadcast %32 : vector<2x16x1xf32> to vector<2x16x16xf32>
    %34 = arith.subf %30, %33 : vector<2x16x16xf32>
    %35 = math.exp %34 : vector<2x16x16xf32>
    %cst_28 = arith.constant dense<0.000000e+00> : vector<2x16xf32>
    %36 = vector.multi_reduction <add>, %35, %cst_28 [2] : vector<2x16x16xf32> to vector<2x16xf32>
    %37 = vector.shape_cast %36 : vector<2x16xf32> to vector<2x16x1xf32>
    %38 = tpu.reciprocal %37 : vector<2x16x1xf32> -> vector<2x16x1xf32>
    %39 = vector.broadcast %38 : vector<2x16x1xf32> to vector<2x16x16xf32>
    %40 = arith.mulf %35, %39 : vector<2x16x16xf32>
    "tpu.trace_start"() <{level = 10 : i32, message = "bst,bth->bsh"}> : () -> ()
    %cst_29 = arith.constant dense<0.000000e+00> : vector<2x16x128xf32>
    %41 = tpu.matmul %40, %9, %cst_29 {dimension_numbers = #tpu.dot_dimension_numbers<[2], [1], [1], [2], [0, 0, 0, 1, 1, 2], [0], [0]>} : vector<2x16x16xf32>, vector<2x16x128xf32>, vector<2x16x128xf32> -> vector<2x16x128xf32>
    "tpu.trace_stop"() : () -> ()
    %42 = vector.shape_cast %41 : vector<2x16x128xf32> to vector<32x128xf32>
    %c0_30 = arith.constant 0 : index
    %c0_31 = arith.constant 0 : index
    %43 = vector.load %arg6[%c0_30, %c0_31] : memref<128x128xf32, #tpu.memory_space<vmem>>, vector<128x128xf32>
    %cst_32 = arith.constant dense<0.000000e+00> : vector<32x128xf32>
    %44 = tpu.matmul %42, %43, %cst_32 {dimension_numbers = #tpu.dot_dimension_numbers<[1], [0], [0], [1], [0, 0, 1, 1], [], []>} : vector<32x128xf32>, vector<128x128xf32>, vector<32x128xf32> -> vector<32x128xf32>
    %c0_33 = arith.constant 0 : index
    %c0_34 = arith.constant 0 : index
    %45 = vector.load %arg7[%c0_33, %c0_34] : memref<1x128xf32, #tpu.memory_space<vmem>>, vector<1x128xf32>
    %46 = vector.broadcast %45 : vector<1x128xf32> to vector<32x128xf32>
    %47 = arith.addf %44, %46 : vector<32x128xf32>
    %48 = vector.shape_cast %47 : vector<32x128xf32> to vector<2x16x128xf32>
    %c0_35 = arith.constant 0 : index
    %c0_36 = arith.constant 0 : index
    %c0_37 = arith.constant 0 : index
    %49 = vector.load %arg8[%c0_35, %c0_36, %c0_37] : memref<2x16x128xf32, #tpu.memory_space<vmem>>, vector<2x16x128xf32>
    tpu.vector_store %arg8[%c0_35, %c0_36, %c0_37], %48 {strides = array<i32>} : memref<2x16x128xf32, #tpu.memory_space<vmem>>, vector<2x16x128xf32>,
    return
  }
  func.func @transform_0(%arg0: i32) -> (i32, i32, i32) {
    %c0_i32 = arith.constant 0 : i32
    %c0_i32_0 = arith.constant 0 : i32
    %c0_i32_1 = arith.constant 0 : i32
    return %arg0, %c0_i32, %c0_i32_0 : i32, i32, i32
  }
  func.func @transform_1(%arg0: i32) -> (i32, i32, i32) {
    %c0_i32 = arith.constant 0 : i32
    %c0_i32_0 = arith.constant 0 : i32
    %c0_i32_1 = arith.constant 0 : i32
    return %arg0, %c0_i32, %c0_i32_0 : i32, i32, i32
  }
  func.func @transform_2(%arg0: i32) -> (i32, i32, i32) {
    %c0_i32 = arith.constant 0 : i32
    %c0_i32_0 = arith.constant 0 : i32
    %c0_i32_1 = arith.constant 0 : i32
    return %arg0, %c0_i32, %c0_i32_0 : i32, i32, i32
  }
  func.func @transform_3(%arg0: i32) -> (i32, i32, i32) {
    %c0_i32 = arith.constant 0 : i32
    %c0_i32_0 = arith.constant 0 : i32
    %c0_i32_1 = arith.constant 0 : i32
    %c0_i32_2 = arith.constant 0 : i32
    return %c0_i32, %c0_i32_0, %c0_i32_1 : i32, i32, i32
  }
  func.func @transform_4(%arg0: i32) -> (i32, i32, i32) {
    %c0_i32 = arith.constant 0 : i32
    %c0_i32_0 = arith.constant 0 : i32
    %c0_i32_1 = arith.constant 0 : i32
    %c0_i32_2 = arith.constant 0 : i32
    return %c0_i32, %c0_i32_0, %c0_i32_1 : i32, i32, i32
  }
  func.func @transform_5(%arg0: i32) -> (i32, i32) {
    %c0_i32 = arith.constant 0 : i32
    %c0_i32_0 = arith.constant 0 : i32
    %c0_i32_1 = arith.constant 0 : i32
    return %c0_i32, %c0_i32_0 : i32, i32
  }
  func.func @transform_6(%arg0: i32) -> (i32, i32) {
    %c0_i32 = arith.constant 0 : i32
    %c0_i32_0 = arith.constant 0 : i32
    %c0_i32_1 = arith.constant 0 : i32
    return %c0_i32, %c0_i32_0 : i32, i32
  }
  func.func @transform_7(%arg0: i32) -> (i32, i32, i32) {
    %c0_i32 = arith.constant 0 : i32
    %c0_i32_0 = arith.constant 0 : i32
    %c0_i32_1 = arith.constant 0 : i32
    return %arg0, %c0_i32, %c0_i32_0 : i32, i32, i32
  }
}

module attributes {stable_mosaic.version = 11 : i64} {
  func.func @att_kernel(%arg0: i32, %arg1: memref<2x16x128xf32, #tpu.memory_space<vmem>>, %arg2: memref<2x16x128xf32, #tpu.memory_space<vmem>>, %arg3: memref<2x16x128xf32, #tpu.memory_space<vmem>>, %arg4: memref<3x128x128xf32, #tpu.memory_space<vmem>>, %arg5: memref<3x1x128xf32, #tpu.memory_space<vmem>>, %arg6: memref<128x128xf32, #tpu.memory_space<vmem>>, %arg7: memref<1x128xf32, #tpu.memory_space<vmem>>, %arg8: memref<2x16x128xf32, #tpu.memory_space<vmem>>) attributes {dimension_semantics = [#tpu.dimension_semantics<parallel>], iteration_bounds = array<i64: 1>, scalar_prefetch = 0 : i64, scratch_operands = 0 : i64, tpu.core_type = #tpu.core_type<tc>, window_params = [{transform_indices = @transform_0, window_bounds = array<i64: 2, 16, 128>}, {transform_indices = @transform_1, window_bounds = array<i64: 2, 16, 128>}, {transform_indices = @transform_2, window_bounds = array<i64: 2, 16, 128>}, {pipeline_mode = #tpu.pipeline_mode<synchronous>, transform_indices = @transform_3, window_bounds = array<i64: 3, 128, 128>}, {pipeline_mode = #tpu.pipeline_mode<synchronous>, transform_indices = @transform_4, window_bounds = array<i64: 3, 1, 128>}, {pipeline_mode = #tpu.pipeline_mode<synchronous>, transform_indices = @transform_5, window_bounds = array<i64: 128, 128>}, {pipeline_mode = #tpu.pipeline_mode<synchronous>, transform_indices = @transform_6, window_bounds = array<i64: 1, 128>}, {transform_indices = @transform_7, window_bounds = array<i64: 2, 16, 128>}]} {
    %c0 = arith.constant 0 : index
    %c0_0 = arith.constant 0 : index
    %c0_1 = arith.constant 0 : index
    %0 = vector.load %arg1[%c0, %c0_0, %c0_1] : memref<2x16x128xf32, #tpu.memory_space<vmem>>, vector<2x16x128xf32>
    %1 = vector.shape_cast %0 : vector<2x16x128xf32> to vector<32x128xf32>
    %c0_2 = arith.constant 0 : index
    %c0_3 = arith.constant 0 : index
    %c0_4 = arith.constant 0 : index
    %2 = vector.load %arg4[%c0_2, %c0_3, %c0_4] : memref<3x128x128xf32, #tpu.memory_space<vmem>>, vector<1x128x128xf32>
    %3 = vector.shape_cast %2 : vector<1x128x128xf32> to vector<128x128xf32>
    %cst = arith.constant dense<0.000000e+00> : vector<32x128xf32>
    %4 = tpu.matmul %1, %3, %cst {dimension_numbers = #tpu.dot_dimension_numbers<[1], [0], [0], [1], [0, 0, 1, 1], [], []>} : vector<32x128xf32>, vector<128x128xf32>, vector<32x128xf32> -> vector<32x128xf32>
    %c0_5 = arith.constant 0 : index
    %c0_6 = arith.constant 0 : index
    %c0_7 = arith.constant 0 : index
    %5 = vector.load %arg5[%c0_5, %c0_6, %c0_7] : memref<3x1x128xf32, #tpu.memory_space<vmem>>, vector<1x1x128xf32>
    %6 = vector.shape_cast %5 : vector<1x1x128xf32> to vector<1x128xf32>
    %7 = vector.broadcast %6 : vector<1x128xf32> to vector<32x128xf32>
    %8 = arith.addf %4, %7 : vector<32x128xf32>
    %9 = vector.shape_cast %8 : vector<32x128xf32> to vector<2x16x128xf32>
    %c0_8 = arith.constant 0 : index
    %c0_9 = arith.constant 0 : index
    %c0_10 = arith.constant 0 : index
    %10 = vector.load %arg2[%c0_8, %c0_9, %c0_10] : memref<2x16x128xf32, #tpu.memory_space<vmem>>, vector<2x16x128xf32>
    %11 = vector.shape_cast %10 : vector<2x16x128xf32> to vector<32x128xf32>
    %c1 = arith.constant 1 : index
    %c0_11 = arith.constant 0 : index
    %c0_12 = arith.constant 0 : index
    %12 = vector.load %arg4[%c1, %c0_11, %c0_12] : memref<3x128x128xf32, #tpu.memory_space<vmem>>, vector<1x128x128xf32>
    %13 = vector.shape_cast %12 : vector<1x128x128xf32> to vector<128x128xf32>
    %cst_13 = arith.constant dense<0.000000e+00> : vector<32x128xf32>
    %14 = tpu.matmul %11, %13, %cst_13 {dimension_numbers = #tpu.dot_dimension_numbers<[1], [0], [0], [1], [0, 0, 1, 1], [], []>} : vector<32x128xf32>, vector<128x128xf32>, vector<32x128xf32> -> vector<32x128xf32>
    %c1_14 = arith.constant 1 : index
    %c0_15 = arith.constant 0 : index
    %c0_16 = arith.constant 0 : index
    %15 = vector.load %arg5[%c1_14, %c0_15, %c0_16] : memref<3x1x128xf32, #tpu.memory_space<vmem>>, vector<1x1x128xf32>
    %16 = vector.shape_cast %15 : vector<1x1x128xf32> to vector<1x128xf32>
    %17 = vector.broadcast %16 : vector<1x128xf32> to vector<32x128xf32>
    %18 = arith.addf %14, %17 : vector<32x128xf32>
    %19 = vector.shape_cast %18 : vector<32x128xf32> to vector<2x16x128xf32>
    %c0_17 = arith.constant 0 : index
    %c0_18 = arith.constant 0 : index
    %c0_19 = arith.constant 0 : index
    %20 = vector.load %arg3[%c0_17, %c0_18, %c0_19] : memref<2x16x128xf32, #tpu.memory_space<vmem>>, vector<2x16x128xf32>
    %21 = vector.shape_cast %20 : vector<2x16x128xf32> to vector<32x128xf32>
    %c2 = arith.constant 2 : index
    %c0_20 = arith.constant 0 : index
    %c0_21 = arith.constant 0 : index
    %22 = vector.load %arg4[%c2, %c0_20, %c0_21] : memref<3x128x128xf32, #tpu.memory_space<vmem>>, vector<1x128x128xf32>
    %23 = vector.shape_cast %22 : vector<1x128x128xf32> to vector<128x128xf32>
    %cst_22 = arith.constant dense<0.000000e+00> : vector<32x128xf32>
    %24 = tpu.matmul %21, %23, %cst_22 {dimension_numbers = #tpu.dot_dimension_numbers<[1], [0], [0], [1], [0, 0, 1, 1], [], []>} : vector<32x128xf32>, vector<128x128xf32>, vector<32x128xf32> -> vector<32x128xf32>
    %c2_23 = arith.constant 2 : index
    %c0_24 = arith.constant 0 : index
    %c0_25 = arith.constant 0 : index
    %25 = vector.load %arg5[%c2_23, %c0_24, %c0_25] : memref<3x1x128xf32, #tpu.memory_space<vmem>>, vector<1x1x128xf32>
    %26 = vector.shape_cast %25 : vector<1x1x128xf32> to vector<1x128xf32>
    %27 = vector.broadcast %26 : vector<1x128xf32> to vector<32x128xf32>
    %28 = arith.addf %24, %27 : vector<32x128xf32>
    %29 = vector.shape_cast %28 : vector<32x128xf32> to vector<2x16x128xf32>
    "tpu.trace_start"() <{level = 10 : i32, message = "bsh,bth->bst"}> : () -> ()
    %cst_26 = arith.constant dense<0.000000e+00> : vector<2x16x16xf32>
    %30 = tpu.matmul %29, %19, %cst_26 {dimension_numbers = #tpu.dot_dimension_numbers<[2], [2], [1], [1], [0, 0, 0, 1, 1, 1], [0], [0]>} : vector<2x16x128xf32>, vector<2x16x128xf32>, vector<2x16x16xf32> -> vector<2x16x16xf32>
    "tpu.trace_stop"() : () -> ()
    %cst_27 = arith.constant dense<0xFF800000> : vector<2x16xf32>
    %31 = vector.multi_reduction <maximumf>, %30, %cst_27 [2] : vector<2x16x16xf32> to vector<2x16xf32>
    %32 = vector.shape_cast %31 : vector<2x16xf32> to vector<2x16x1xf32>
    %33 = vector.broadcast %32 : vector<2x16x1xf32> to vector<2x16x16xf32>
    %34 = arith.subf %30, %33 : vector<2x16x16xf32>
    %35 = math.exp %34 : vector<2x16x16xf32>
    %cst_28 = arith.constant dense<0.000000e+00> : vector<2x16xf32>
    %36 = vector.multi_reduction <add>, %35, %cst_28 [2] : vector<2x16x16xf32> to vector<2x16xf32>
    %37 = vector.shape_cast %36 : vector<2x16xf32> to vector<2x16x1xf32>
    %38 = tpu.reciprocal %37 : vector<2x16x1xf32> -> vector<2x16x1xf32>
    %39 = vector.broadcast %38 : vector<2x16x1xf32> to vector<2x16x16xf32>
    %40 = arith.mulf %35, %39 : vector<2x16x16xf32>
    "tpu.trace_start"() <{level = 10 : i32, message = "bst,bth->bsh"}> : () -> ()
    %cst_29 = arith.constant dense<0.000000e+00> : vector<2x16x128xf32>
    %41 = tpu.matmul %40, %9, %cst_29 {dimension_numbers = #tpu.dot_dimension_numbers<[2], [1], [1], [2], [0, 0, 0, 1, 1, 2], [0], [0]>} : vector<2x16x16xf32>, vector<2x16x128xf32>, vector<2x16x128xf32> -> vector<2x16x128xf32>
    "tpu.trace_stop"() : () -> ()
    %42 = vector.shape_cast %41 : vector<2x16x128xf32> to vector<32x128xf32>
    %c0_30 = arith.constant 0 : index
    %c0_31 = arith.constant 0 : index
    %43 = vector.load %arg6[%c0_30, %c0_31] : memref<128x128xf32, #tpu.memory_space<vmem>>, vector<128x128xf32>
    %cst_32 = arith.constant dense<0.000000e+00> : vector<32x128xf32>
    %44 = tpu.matmul %42, %43, %cst_32 {dimension_numbers = #tpu.dot_dimension_numbers<[1], [0], [0], [1], [0, 0, 1, 1], [], []>} : vector<32x128xf32>, vector<128x128xf32>, vector<32x128xf32> -> vector<32x128xf32>
    %c0_33 = arith.constant 0 : index
    %c0_34 = arith.constant 0 : index
    %45 = vector.load %arg7[%c0_33, %c0_34] : memref<1x128xf32, #tpu.memory_space<vmem>>, vector<1x128xf32>
    %46 = vector.broadcast %45 : vector<1x128xf32> to vector<32x128xf32>
    %47 = arith.addf %44, %46 : vector<32x128xf32>
    %48 = vector.shape_cast %47 : vector<32x128xf32> to vector<2x16x128xf32>
    %c0_35 = arith.constant 0 : index
    %c0_36 = arith.constant 0 : index
    %c0_37 = arith.constant 0 : index
    %49 = vector.load %arg8[%c0_35, %c0_36, %c0_37] : memref<2x16x128xf32, #tpu.memory_space<vmem>>, vector<2x16x128xf32>
    tpu.vector_store %arg8[%c0_35, %c0_36, %c0_37], %48 {strides = array<i32>} : memref<2x16x128xf32, #tpu.memory_space<vmem>>, vector<2x16x128xf32>,
    return
  }
  func.func @transform_0(%arg0: i32) -> (i32, i32, i32) {
    %c0_i32 = arith.constant 0 : i32
    %c0_i32_0 = arith.constant 0 : i32
    %c0_i32_1 = arith.constant 0 : i32
    return %arg0, %c0_i32, %c0_i32_0 : i32, i32, i32
  }
  func.func @transform_1(%arg0: i32) -> (i32, i32, i32) {
    %c0_i32 = arith.constant 0 : i32
    %c0_i32_0 = arith.constant 0 : i32
    %c0_i32_1 = arith.constant 0 : i32
    return %arg0, %c0_i32, %c0_i32_0 : i32, i32, i32
  }
  func.func @transform_2(%arg0: i32) -> (i32, i32, i32) {
    %c0_i32 = arith.constant 0 : i32
    %c0_i32_0 = arith.constant 0 : i32
    %c0_i32_1 = arith.constant 0 : i32
    return %arg0, %c0_i32, %c0_i32_0 : i32, i32, i32
  }
  func.func @transform_3(%arg0: i32) -> (i32, i32, i32) {
    %c0_i32 = arith.constant 0 : i32
    %c0_i32_0 = arith.constant 0 : i32
    %c0_i32_1 = arith.constant 0 : i32
    %c0_i32_2 = arith.constant 0 : i32
    return %c0_i32, %c0_i32_0, %c0_i32_1 : i32, i32, i32
  }
  func.func @transform_4(%arg0: i32) -> (i32, i32, i32) {
    %c0_i32 = arith.constant 0 : i32
    %c0_i32_0 = arith.constant 0 : i32
    %c0_i32_1 = arith.constant 0 : i32
    %c0_i32_2 = arith.constant 0 : i32
    return %c0_i32, %c0_i32_0, %c0_i32_1 : i32, i32, i32
  }
  func.func @transform_5(%arg0: i32) -> (i32, i32) {
    %c0_i32 = arith.constant 0 : i32
    %c0_i32_0 = arith.constant 0 : i32
    %c0_i32_1 = arith.constant 0 : i32
    return %c0_i32, %c0_i32_0 : i32, i32
  }
  func.func @transform_6(%arg0: i32) -> (i32, i32) {
    %c0_i32 = arith.constant 0 : i32
    %c0_i32_0 = arith.constant 0 : i32
    %c0_i32_1 = arith.constant 0 : i32
    return %c0_i32, %c0_i32_0 : i32, i32
  }
  func.func @transform_7(%arg0: i32) -> (i32, i32, i32) {
    %c0_i32 = arith.constant 0 : i32
    %c0_i32_0 = arith.constant 0 : i32
    %c0_i32_1 = arith.constant 0 : i32
    return %arg0, %c0_i32, %c0_i32_0 : i32, i32, i32
  }
}

</mosaic_0001>

<llo_original>
// kernel: tpu_custom_call.1
$region0: #{tpu_custom_call.1}
  #allocation0 [shape = 'u32[]', space=smem, size = 0x4, offset = 0x4, fixed_abs, tag = 'smem constant byte address 0x4 - core index']
  #allocation1 [shape = 'u32[144,128]{1,0:T(1,128)}', space=vmem, size = 0x12000, scoped, tag = 'internal scratch']
  %s0 = inlined_call_operand.hbm [shape: f32[2,16,128], index: 0, kind: input, shape index: {}]
  %s1 = inlined_call_operand.hbm [shape: f32[2,16,128], index: 1, kind: input, shape index: {}]
  %s2 = inlined_call_operand.hbm [shape: f32[2,16,128], index: 2, kind: input, shape index: {}]
  %s3 = inlined_call_operand.hbm [shape: f32[3,128,128], index: 3, kind: input, shape index: {}]
  %s4 = inlined_call_operand.vmem [shape: f32[3,1,128], index: 4, kind: input, shape index: {}]
  %s5 = inlined_call_operand.hbm [shape: f32[128,128], index: 5, kind: input, shape index: {}]
  %s6 = inlined_call_operand.vmem [shape: f32[1,128], index: 6, kind: input, shape index: {}]
  %s7 = inlined_call_operand.hbm [shape: f32[2,16,128], index: 7, kind: output, shape index: {}]
  %s8 = sld [smem:[#allocation0]]
  $region58: #{tpu_custom_call.1} parent=0
    _
  %s10 = ssub.s32 1, %s8
  %s11 = scalar_select 0, %s10, %s8
  $region1: #{tpu_custom_call.1} parent=0
    #allocation2 [shape = 'u8[16384]{0}', space=vmem, size = 0x4000, scoped, tag = 'input window, operand 0, single buffered']
    #allocation3 [shape = 's32[1]{0}', space=sflag, size = 0x4, scoped, tag = 'scoped memory for tpu_custom_call.1']
    #allocation4 [shape = 's32[1]{0}', space=sflag, size = 0x4, scoped, tag = 'scoped memory for tpu_custom_call.1']
    #allocation5 [shape = 'u8[16384]{0}', space=vmem, size = 0x4000, scoped, tag = 'input window, operand 1, single buffered']
    #allocation6 [shape = 's32[1]{0}', space=sflag, size = 0x4, scoped, tag = 'scoped memory for tpu_custom_call.1']
    #allocation7 [shape = 'u8[16384]{0}', space=vmem, size = 0x4000, scoped, tag = 'input window, operand 2, single buffered']
    #allocation8 [shape = 'u8[196608]{0}', space=vmem, size = 0x30000, scoped, tag = 'input window, operand 3, single buffered']
    #allocation9 [shape = 's32[1]{0}', space=sflag, size = 0x4, scoped, tag = 'scoped memory for tpu_custom_call.1']
    #allocation10 [shape = 'u8[65536]{0}', space=vmem, size = 0x10000, scoped, tag = 'input window, operand 5, single buffered']
    #allocation11 [shape = 'u8[16384]{0}', space=vmem, size = 0x4000, scoped, tag = 'output window, operand 0, single buffered']
    %12 = vsyncpa [#allocation3], 0
    %13 = vsyncpa [#allocation6], 0
    %14 = vsyncpa [#allocation9], 0
    %15 = vsyncpa [#allocation4], 0
    // Predicated region
    $region2: #{tpu_custom_call.1} parent=1 // pred_check
      _
    $region3: #{tpu_custom_call.1} parent=1 // pred_check_branch
      %17 = sbr.rel (0) target = $region5
    $region4: #{tpu_custom_call.1} parent=1 // pred_region
      %s19 = ssub.s32 512, 512
      %20 = vsyncadd [#allocation3], %s19
      %s21 = sshll.u32 [#allocation2], 4
      %s22 = int_to_ptr.vmem [resolvable:$true] %s21
      %27 = dma.hbm_to_vmem [thread:$0]  %s0, 512, %s22, [#allocation3], 128, 128, 8
    $region5: #{tpu_custom_call.1} parent=1 // pred_fallthru
      _
    // Predicated region
    $region6: #{tpu_custom_call.1} parent=1 // pred_check
      _
    $region7: #{tpu_custom_call.1} parent=1 // pred_check_branch
      %29 = sbr.rel (0) target = $region9
    $region8: #{tpu_custom_call.1} parent=1 // pred_region
      %s31 = ssub.s32 512, 512
      %32 = vsyncadd [#allocation6], %s31
      %s33 = sshll.u32 [#allocation5], 4
      %s34 = int_to_ptr.vmem [resolvable:$true] %s33
      %39 = dma.hbm_to_vmem [thread:$0]  %s1, 512, %s34, [#allocation6], 128, 128, 8
    $region9: #{tpu_custom_call.1} parent=1 // pred_fallthru
      _
    // Predicated region
    $region10: #{tpu_custom_call.1} parent=1 // pred_check
      _
    $region11: #{tpu_custom_call.1} parent=1 // pred_check_branch
      %41 = sbr.rel (0) target = $region13
    $region12: #{tpu_custom_call.1} parent=1 // pred_region
      %s43 = ssub.s32 512, 512
      %44 = vsyncadd [#allocation6], %s43
      %s45 = sshll.u32 [#allocation7], 4
      %s46 = int_to_ptr.vmem [resolvable:$true] %s45
      %51 = dma.hbm_to_vmem [thread:$0]  %s2, 512, %s46, [#allocation6], 128, 128, 8
    $region13: #{tpu_custom_call.1} parent=1 // pred_fallthru
      _
    // Predicated region
    $region14: #{tpu_custom_call.1} parent=1 // pred_check
      _
    $region15: #{tpu_custom_call.1} parent=1 // pred_check_branch
      %53 = sbr.rel (0) target = $region17
    $region16: #{tpu_custom_call.1} parent=1 // pred_region
      %s55 = ssub.s32 6144, 6144
      %56 = vsyncadd [#allocation9], %s55
      %s57 = sshll.u32 [#allocation8], 4
      %s58 = int_to_ptr.vmem [resolvable:$true] %s57
      %63 = dma.hbm_to_vmem [thread:$0]  %s3, 6144, %s58, [#allocation9], 128, 128, 8
    $region17: #{tpu_custom_call.1} parent=1 // pred_fallthru
      _
    // Predicated region
    $region18: #{tpu_custom_call.1} parent=1 // pred_check
      _
    $region19: #{tpu_custom_call.1} parent=1 // pred_check_branch
      %65 = sbr.rel (0) target = $region21
    $region20: #{tpu_custom_call.1} parent=1 // pred_region
      _
    $region21: #{tpu_custom_call.1} parent=1 // pred_fallthru
      _
    // Predicated region
    $region22: #{tpu_custom_call.1} parent=1 // pred_check
      _
    $region23: #{tpu_custom_call.1} parent=1 // pred_check_branch
      %67 = sbr.rel (0) target = $region25
    $region24: #{tpu_custom_call.1} parent=1 // pred_region
      %s69 = ssub.s32 2048, 2048
      %70 = vsyncadd [#allocation9], %s69
      %s71 = sshll.u32 [#allocation10], 4
      %s72 = int_to_ptr.vmem [resolvable:$true] %s71
      %77 = dma.hbm_to_vmem [thread:$0]  %s5, 2048, %s72, [#allocation9], 128, 128, 8
    $region25: #{tpu_custom_call.1} parent=1 // pred_fallthru
      _
    // Predicated region
    $region26: #{tpu_custom_call.1} parent=1 // pred_check
      _
    $region27: #{tpu_custom_call.1} parent=1 // pred_check_branch
      %79 = sbr.rel (0) target = $region29
    $region28: #{tpu_custom_call.1} parent=1 // pred_region
      _
    $region29: #{tpu_custom_call.1} parent=1 // pred_fallthru
      _
    // Predicated region
    $region30: #{tpu_custom_call.1} parent=1 // pred_check
      _
    $region31: #{tpu_custom_call.1} parent=1 // pred_check_branch
      %81 = sbr.rel (0) target = $region33
    $region32: #{tpu_custom_call.1} parent=1 // pred_region
      %82 = dma.done [#allocation3], 512
    $region33: #{tpu_custom_call.1} parent=1 // pred_fallthru
      _
    // Predicated region
    $region34: #{tpu_custom_call.1} parent=1 // pred_check
      _
    $region35: #{tpu_custom_call.1} parent=1 // pred_check_branch
      %84 = sbr.rel (0) target = $region37
    $region36: #{tpu_custom_call.1} parent=1 // pred_region
      %85 = dma.done [#allocation6], 512
    $region37: #{tpu_custom_call.1} parent=1 // pred_fallthru
      _
    // Predicated region
    $region38: #{tpu_custom_call.1} parent=1 // pred_check
      _
    $region39: #{tpu_custom_call.1} parent=1 // pred_check_branch
      %87 = sbr.rel (0) target = $region41
    $region40: #{tpu_custom_call.1} parent=1 // pred_region
      %88 = dma.done [#allocation6], 512
    $region41: #{tpu_custom_call.1} parent=1 // pred_fallthru
      _
    // Predicated region
    $region42: #{tpu_custom_call.1} parent=1 // pred_check
      _
    $region43: #{tpu_custom_call.1} parent=1 // pred_check_branch
      %90 = sbr.rel (0) target = $region45
    $region44: #{tpu_custom_call.1} parent=1 // pred_region
      %91 = dma.done [#allocation9], 6144
    $region45: #{tpu_custom_call.1} parent=1 // pred_fallthru
      _
    // Predicated region
    $region46: #{tpu_custom_call.1} parent=1 // pred_check
      _
    $region47: #{tpu_custom_call.1} parent=1 // pred_check_branch
      %93 = sbr.rel (0) target = $region49
    $region48: #{tpu_custom_call.1} parent=1 // pred_region
      %94 = dma.done [#allocation9], 2048
    $region49: #{tpu_custom_call.1} parent=1 // pred_fallthru
      _
    %v95 = vld [vmem:[#allocation2] sm:$0xff]
    %v96 = vld [vmem:[#allocation2 + $0x8] sm:$0xff]
    %v97 = vld [vmem:[#allocation2 + $0x10] sm:$0xff]
    %v98 = vld [vmem:[#allocation2 + $0x18] sm:$0xff]
    %v99 = vld [vmem:[#allocation8] sm:$0xff]
    %v100 = vld [vmem:[#allocation8 + $0x8] sm:$0xff]
    %v101 = vld [vmem:[#allocation8 + $0x10] sm:$0xff]
    %v102 = vld [vmem:[#allocation8 + $0x18] sm:$0xff]
    %v103 = vld [vmem:[#allocation8 + $0x20] sm:$0xff]
    %v104 = vld [vmem:[#allocation8 + $0x28] sm:$0xff]
    %v105 = vld [vmem:[#allocation8 + $0x30] sm:$0xff]
    %v106 = vld [vmem:[#allocation8 + $0x38] sm:$0xff]
    %v107 = vld [vmem:[#allocation8 + $0x40] sm:$0xff]
    %v108 = vld [vmem:[#allocation8 + $0x48] sm:$0xff]
    %v109 = vld [vmem:[#allocation8 + $0x50] sm:$0xff]
    %v110 = vld [vmem:[#allocation8 + $0x58] sm:$0xff]
    %v111 = vld [vmem:[#allocation8 + $0x60] sm:$0xff]
    %v112 = vld [vmem:[#allocation8 + $0x68] sm:$0xff]
    %v113 = vld [vmem:[#allocation8 + $0x70] sm:$0xff]
    %v114 = vld [vmem:[#allocation8 + $0x78] sm:$0xff]
    %v115 = vld [vmem:[%s4] sm:$0x1]
    %v117 = vlaneseq
    %v118 = vshrl.u32 %v117, 7
    %v119 = vsub.s32 0, %v118
    %v120 = vrot.slane %v115, %v119
    %122 = vmatprep.subr.mxu0 0.0
    %123 = vmatpush1.msra.mxu0 %v99
    %124 = vmatprep.subr.mxu0 0.0
    %125 = vmatpush1.msra.mxu0 %v100
    %126 = vmatprep.subr.mxu0 0.0
    %127 = vmatpush1.msra.mxu0 %v101
    %128 = vmatprep.subr.mxu0 0.0
    %129 = vmatpush1.msra.mxu0 %v102
    %130 = vmatprep.subr.mxu0 0.0
    %131 = vmatpush1.msra.mxu0 %v103
    %132 = vmatprep.subr.mxu0 0.0
    %133 = vmatpush1.msra.mxu0 %v104
    %134 = vmatprep.subr.mxu0 0.0
    %135 = vmatpush1.msra.mxu0 %v105
    %136 = vmatprep.subr.mxu0 0.0
    %137 = vmatpush1.msra.mxu0 %v106
    %138 = vmatprep.subr.mxu0 0.0
    %139 = vmatpush1.msra.mxu0 %v107
    %140 = vmatprep.subr.mxu0 0.0
    %141 = vmatpush1.msra.mxu0 %v108
    %142 = vmatprep.subr.mxu0 0.0
    %143 = vmatpush1.msra.mxu0 %v109
    %144 = vmatprep.subr.mxu0 0.0
    %145 = vmatpush1.msra.mxu0 %v110
    %146 = vmatprep.subr.mxu0 0.0
    %147 = vmatpush1.msra.mxu0 %v111
    %148 = vmatprep.subr.mxu0 0.0
    %149 = vmatpush1.msra.mxu0 %v112
    %150 = vmatprep.subr.mxu0 0.0
    %151 = vmatpush1.msra.mxu0 %v113
    %152 = vmatprep.subr.mxu0 0.0
    %153 = vmatpush1.msra.mxu0 %v114
    %154 = vmatprep.subr.mxu0 0.0
    %155 = vmatpush1.msra.mxu0 0.0
    %156 = vmatprep.subr.mxu0 0.0
    %157 = vmatpush1.msra.mxu0 0.0
    %158 = vmatprep.subr.mxu0 0.0
    %159 = vmatpush1.msra.mxu0 0.0
    %160 = vmatprep.subr.mxu0 0.0
    %161 = vmatpush1.msra.mxu0 0.0
    %162 = vmatprep.subr.mxu0 0.0
    %163 = vmatpush1.msra.mxu0 0.0
    %164 = vmatprep.subr.mxu0 0.0
    %165 = vmatpush1.msra.mxu0 0.0
    %166 = vmatprep.subr.mxu0 0.0
    %167 = vmatpush1.msra.mxu0 0.0
    %168 = vmatprep.subr.mxu0 0.0
    %169 = vmatpush1.msra.mxu0 0.0
    %170 = vmatprep.subr.mxu0 0.0
    %171 = vmatpush1.msra.mxu0 0.0
    %172 = vmatprep.subr.mxu0 0.0
    %173 = vmatpush1.msra.mxu0 0.0
    %174 = vmatprep.subr.mxu0 0.0
    %175 = vmatpush1.msra.mxu0 0.0
    %176 = vmatprep.subr.mxu0 0.0
    %177 = vmatpush1.msra.mxu0 0.0
    %178 = vmatprep.subr.mxu0 0.0
    %179 = vmatpush1.msra.mxu0 0.0
    %180 = vmatprep.subr.mxu0 0.0
    %181 = vmatpush1.msra.mxu0 0.0
    %182 = vmatprep.subr.mxu0 0.0
    %183 = vmatpush1.msra.mxu0 0.0
    %184 = vmatprep.subr.mxu0 0.0
    %185 = vmatpush1.msra.mxu0 0.0
    %186 = vmatprep.mubr.f32.mxu0 0.0
    %187 = vmatmul.mubr.f32.gmra.mrb[0].mxu0 %v95
    %v188 = vpop.f32.mrb[0].mxu0
    %v189 = vadd.f32 %v120, %v188
    %v190 = vpop.f32.mrb[0].mxu0
    %191 = vmatprep.mubr.f32.mxu0 0.0
    %192 = vmatmul.mubr.f32.gmra.mrb[0].mxu0 %v96
    %v193 = vpop.f32.mrb[0].mxu0
    %v194 = vadd.f32 %v120, %v193
    %v195 = vpop.f32.mrb[0].mxu0
    %196 = vmatprep.mubr.f32.mxu0 0.0
    %197 = vmatmul.mubr.f32.gmra.mrb[0].mxu0 %v97
    %v198 = vpop.f32.mrb[0].mxu0
    %v199 = vadd.f32 %v120, %v198
    %v200 = vpop.f32.mrb[0].mxu0
    %201 = vmatprep.mubr.f32.mxu0 0.0
    %202 = vmatmul.mubr.f32.gmra.mrb[0].mxu0 %v98
    %v203 = vpop.f32.mrb[0].mxu0
    %v204 = vadd.f32 %v120, %v203
    %v205 = vpop.f32.mrb[0].mxu0
    %206 = vdwg.mxu0
    %v207 = vld [vmem:[#allocation5] sm:$0xff]
    %v208 = vld [vmem:[#allocation5 + $0x8] sm:$0xff]
    %v209 = vld [vmem:[#allocation5 + $0x10] sm:$0xff]
    %v210 = vld [vmem:[#allocation5 + $0x18] sm:$0xff]
    %s211 = scalar_lea.vmem [#allocation8], 128
    %v212 = vld [vmem:[%s211] sm:$0xff]
    %v213 = vld [vmem:[%s211 + $0x8] sm:$0xff]
    %v214 = vld [vmem:[%s211 + $0x10] sm:$0xff]
    %v215 = vld [vmem:[%s211 + $0x18] sm:$0xff]
    %v216 = vld [vmem:[%s211 + $0x20] sm:$0xff]
    %v217 = vld [vmem:[%s211 + $0x28] sm:$0xff]
    %v218 = vld [vmem:[%s211 + $0x30] sm:$0xff]
    %v219 = vld [vmem:[%s211 + $0x38] sm:$0xff]
    %v220 = vld [vmem:[%s211 + $0x40] sm:$0xff]
    %v221 = vld [vmem:[%s211 + $0x48] sm:$0xff]
    %v222 = vld [vmem:[%s211 + $0x50] sm:$0xff]
    %v223 = vld [vmem:[%s211 + $0x58] sm:$0xff]
    %v224 = vld [vmem:[%s211 + $0x60] sm:$0xff]
    %v225 = vld [vmem:[%s211 + $0x68] sm:$0xff]
    %v226 = vld [vmem:[%s211 + $0x70] sm:$0xff]
    %v227 = vld [vmem:[%s211 + $0x78] sm:$0xff]
    %s228 = scalar_lea.vmem %s4, 1
    %v229 = vld [vmem:[%s228] sm:$0x1]
    %v231 = vlaneseq
    %v232 = vshrl.u32 %v231, 7
    %v233 = vsub.s32 0, %v232
    %v234 = vrot.slane %v229, %v233
    %236 = vmatprep.subr.mxu0 0.0
    %237 = vmatpush1.msra.mxu0 %v212
    %238 = vmatprep.subr.mxu0 0.0
    %239 = vmatpush1.msra.mxu0 %v213
    %240 = vmatprep.subr.mxu0 0.0
    %241 = vmatpush1.msra.mxu0 %v214
    %242 = vmatprep.subr.mxu0 0.0
    %243 = vmatpush1.msra.mxu0 %v215
    %244 = vmatprep.subr.mxu0 0.0
    %245 = vmatpush1.msra.mxu0 %v216
    %246 = vmatprep.subr.mxu0 0.0
    %247 = vmatpush1.msra.mxu0 %v217
    %248 = vmatprep.subr.mxu0 0.0
    %249 = vmatpush1.msra.mxu0 %v218
    %250 = vmatprep.subr.mxu0 0.0
    %251 = vmatpush1.msra.mxu0 %v219
    %252 = vmatprep.subr.mxu0 0.0
    %253 = vmatpush1.msra.mxu0 %v220
    %254 = vmatprep.subr.mxu0 0.0
    %255 = vmatpush1.msra.mxu0 %v221
    %256 = vmatprep.subr.mxu0 0.0
    %257 = vmatpush1.msra.mxu0 %v222
    %258 = vmatprep.subr.mxu0 0.0
    %259 = vmatpush1.msra.mxu0 %v223
    %260 = vmatprep.subr.mxu0 0.0
    %261 = vmatpush1.msra.mxu0 %v224
    %262 = vmatprep.subr.mxu0 0.0
    %263 = vmatpush1.msra.mxu0 %v225
    %264 = vmatprep.subr.mxu0 0.0
    %265 = vmatpush1.msra.mxu0 %v226
    %266 = vmatprep.subr.mxu0 0.0
    %267 = vmatpush1.msra.mxu0 %v227
    %268 = vmatprep.subr.mxu0 0.0
    %269 = vmatpush1.msra.mxu0 0.0
    %270 = vmatprep.subr.mxu0 0.0
    %271 = vmatpush1.msra.mxu0 0.0
    %272 = vmatprep.subr.mxu0 0.0
    %273 = vmatpush1.msra.mxu0 0.0
    %274 = vmatprep.subr.mxu0 0.0
    %275 = vmatpush1.msra.mxu0 0.0
    %276 = vmatprep.subr.mxu0 0.0
    %277 = vmatpush1.msra.mxu0 0.0
    %278 = vmatprep.subr.mxu0 0.0
    %279 = vmatpush1.msra.mxu0 0.0
    %280 = vmatprep.subr.mxu0 0.0
    %281 = vmatpush1.msra.mxu0 0.0
    %282 = vmatprep.subr.mxu0 0.0
    %283 = vmatpush1.msra.mxu0 0.0
    %284 = vmatprep.subr.mxu0 0.0
    %285 = vmatpush1.msra.mxu0 0.0
    %286 = vmatprep.subr.mxu0 0.0
    %287 = vmatpush1.msra.mxu0 0.0
    %288 = vmatprep.subr.mxu0 0.0
    %289 = vmatpush1.msra.mxu0 0.0
    %290 = vmatprep.subr.mxu0 0.0
    %291 = vmatpush1.msra.mxu0 0.0
    %292 = vmatprep.subr.mxu0 0.0
    %293 = vmatpush1.msra.mxu0 0.0
    %294 = vmatprep.subr.mxu0 0.0
    %295 = vmatpush1.msra.mxu0 0.0
    %296 = vmatprep.subr.mxu0 0.0
    %297 = vmatpush1.msra.mxu0 0.0
    %298 = vmatprep.subr.mxu0 0.0
    %299 = vmatpush1.msra.mxu0 0.0
    %300 = vmatprep.mubr.f32.mxu0 0.0
    %301 = vmatmul.mubr.f32.gmra.mrb[0].mxu0 %v207
    %v302 = vpop.f32.mrb[0].mxu0
    %v303 = vadd.f32 %v234, %v302
    %v304 = vpop.f32.mrb[0].mxu0
    %305 = vmatprep.mubr.f32.mxu0 0.0
    %306 = vmatmul.mubr.f32.gmra.mrb[0].mxu0 %v208
    %v307 = vpop.f32.mrb[0].mxu0
    %v308 = vadd.f32 %v234, %v307
    %v309 = vpop.f32.mrb[0].mxu0
    %310 = vmatprep.mubr.f32.mxu0 0.0
    %311 = vmatmul.mubr.f32.gmra.mrb[0].mxu0 %v209
    %v312 = vpop.f32.mrb[0].mxu0
    %v313 = vadd.f32 %v234, %v312
    %v314 = vpop.f32.mrb[0].mxu0
    %315 = vmatprep.mubr.f32.mxu0 0.0
    %316 = vmatmul.mubr.f32.gmra.mrb[0].mxu0 %v210
    %v317 = vpop.f32.mrb[0].mxu0
    %v318 = vadd.f32 %v234, %v317
    %v319 = vpop.f32.mrb[0].mxu0
    %320 = vdwg.mxu0
    %v321 = vld [vmem:[#allocation7] sm:$0xff]
    %v322 = vld [vmem:[#allocation7 + $0x8] sm:$0xff]
    %v323 = vld [vmem:[#allocation7 + $0x10] sm:$0xff]
    %v324 = vld [vmem:[#allocation7 + $0x18] sm:$0xff]
    %s325 = scalar_lea.vmem [#allocation8], 256
    %v326 = vld [vmem:[%s325] sm:$0xff]
    %v327 = vld [vmem:[%s325 + $0x8] sm:$0xff]
    %v328 = vld [vmem:[%s325 + $0x10] sm:$0xff]
    %v329 = vld [vmem:[%s325 + $0x18] sm:$0xff]
    %v330 = vld [vmem:[%s325 + $0x20] sm:$0xff]
    %v331 = vld [vmem:[%s325 + $0x28] sm:$0xff]
    %v332 = vld [vmem:[%s325 + $0x30] sm:$0xff]
    %v333 = vld [vmem:[%s325 + $0x38] sm:$0xff]
    %v334 = vld [vmem:[%s325 + $0x40] sm:$0xff]
    %v335 = vld [vmem:[%s325 + $0x48] sm:$0xff]
    %v336 = vld [vmem:[%s325 + $0x50] sm:$0xff]
    %v337 = vld [vmem:[%s325 + $0x58] sm:$0xff]
    %v338 = vld [vmem:[%s325 + $0x60] sm:$0xff]
    %v339 = vld [vmem:[%s325 + $0x68] sm:$0xff]
    %v340 = vld [vmem:[%s325 + $0x70] sm:$0xff]
    %v341 = vld [vmem:[%s325 + $0x78] sm:$0xff]
    %s342 = scalar_lea.vmem %s4, 2
    %v343 = vld [vmem:[%s342] sm:$0x1]
    %v345 = vlaneseq
    %v346 = vshrl.u32 %v345, 7
    %v347 = vsub.s32 0, %v346
    %v348 = vrot.slane %v343, %v347
    %350 = vmatprep.subr.mxu0 0.0
    %351 = vmatpush1.msra.mxu0 %v326
    %352 = vmatprep.subr.mxu0 0.0
    %353 = vmatpush1.msra.mxu0 %v327
    %354 = vmatprep.subr.mxu0 0.0
    %355 = vmatpush1.msra.mxu0 %v328
    %356 = vmatprep.subr.mxu0 0.0
    %357 = vmatpush1.msra.mxu0 %v329
    %358 = vmatprep.subr.mxu0 0.0
    %359 = vmatpush1.msra.mxu0 %v330
    %360 = vmatprep.subr.mxu0 0.0
    %361 = vmatpush1.msra.mxu0 %v331
    %362 = vmatprep.subr.mxu0 0.0
    %363 = vmatpush1.msra.mxu0 %v332
    %364 = vmatprep.subr.mxu0 0.0
    %365 = vmatpush1.msra.mxu0 %v333
    %366 = vmatprep.subr.mxu0 0.0
    %367 = vmatpush1.msra.mxu0 %v334
    %368 = vmatprep.subr.mxu0 0.0
    %369 = vmatpush1.msra.mxu0 %v335
    %370 = vmatprep.subr.mxu0 0.0
    %371 = vmatpush1.msra.mxu0 %v336
    %372 = vmatprep.subr.mxu0 0.0
    %373 = vmatpush1.msra.mxu0 %v337
    %374 = vmatprep.subr.mxu0 0.0
    %375 = vmatpush1.msra.mxu0 %v338
    %376 = vmatprep.subr.mxu0 0.0
    %377 = vmatpush1.msra.mxu0 %v339
    %378 = vmatprep.subr.mxu0 0.0
    %379 = vmatpush1.msra.mxu0 %v340
    %380 = vmatprep.subr.mxu0 0.0
    %381 = vmatpush1.msra.mxu0 %v341
    %382 = vmatprep.subr.mxu0 0.0
    %383 = vmatpush1.msra.mxu0 0.0
    %384 = vmatprep.subr.mxu0 0.0
    %385 = vmatpush1.msra.mxu0 0.0
    %386 = vmatprep.subr.mxu0 0.0
    %387 = vmatpush1.msra.mxu0 0.0
    %388 = vmatprep.subr.mxu0 0.0
    %389 = vmatpush1.msra.mxu0 0.0
    %390 = vmatprep.subr.mxu0 0.0
    %391 = vmatpush1.msra.mxu0 0.0
    %392 = vmatprep.subr.mxu0 0.0
    %393 = vmatpush1.msra.mxu0 0.0
    %394 = vmatprep.subr.mxu0 0.0
    %395 = vmatpush1.msra.mxu0 0.0
    %396 = vmatprep.subr.mxu0 0.0
    %397 = vmatpush1.msra.mxu0 0.0
    %398 = vmatprep.subr.mxu0 0.0
    %399 = vmatpush1.msra.mxu0 0.0
    %400 = vmatprep.subr.mxu0 0.0
    %401 = vmatpush1.msra.mxu0 0.0
    %402 = vmatprep.subr.mxu0 0.0
    %403 = vmatpush1.msra.mxu0 0.0
    %404 = vmatprep.subr.mxu0 0.0
    %405 = vmatpush1.msra.mxu0 0.0
    %406 = vmatprep.subr.mxu0 0.0
    %407 = vmatpush1.msra.mxu0 0.0
    %408 = vmatprep.subr.mxu0 0.0
    %409 = vmatpush1.msra.mxu0 0.0
    %410 = vmatprep.subr.mxu0 0.0
    %411 = vmatpush1.msra.mxu0 0.0
    %412 = vmatprep.subr.mxu0 0.0
    %413 = vmatpush1.msra.mxu0 0.0
    %414 = vmatprep.mubr.f32.mxu0 0.0
    %415 = vmatmul.mubr.f32.gmra.mrb[0].mxu0 %v321
    %v416 = vpop.f32.mrb[0].mxu0
    %v417 = vadd.f32 %v348, %v416
    %v418 = vpop.f32.mrb[0].mxu0
    %419 = vmatprep.mubr.f32.mxu0 0.0
    %420 = vmatmul.mubr.f32.gmra.mrb[0].mxu0 %v322
    %v421 = vpop.f32.mrb[0].mxu0
    %v422 = vadd.f32 %v348, %v421
    %v423 = vpop.f32.mrb[0].mxu0
    %424 = vmatprep.mubr.f32.mxu0 0.0
    %425 = vmatmul.mubr.f32.gmra.mrb[0].mxu0 %v323
    %v426 = vpop.f32.mrb[0].mxu0
    %v427 = vadd.f32 %v348, %v426
    %v428 = vpop.f32.mrb[0].mxu0
    %429 = vmatprep.mubr.f32.mxu0 0.0
    %430 = vmatmul.mubr.f32.gmra.mrb[0].mxu0 %v324
    %v431 = vpop.f32.mrb[0].mxu0
    %v432 = vadd.f32 %v348, %v431
    %v433 = vpop.f32.mrb[0].mxu0
    %434 = vdwg.mxu0
    %435 = vmatprep.subr.mxu0 0.0
    %436 = vmatpush1.xpose.msra.mxu0 %v303
    %437 = vmatprep.subr.mxu0 0.0
    %438 = vmatpush1.xpose.msra.mxu0 %v308
    %439 = vmatprep.subr.mxu0 0.0
    %440 = vmatpush1.xpose.msra.mxu0 0.0
    %441 = vmatprep.subr.mxu0 0.0
    %442 = vmatpush1.xpose.msra.mxu0 0.0
    %443 = vmatprep.subr.mxu0 0.0
    %444 = vmatpush1.xpose.msra.mxu0 0.0
    %445 = vmatprep.subr.mxu0 0.0
    %446 = vmatpush1.xpose.msra.mxu0 0.0
    %447 = vmatprep.subr.mxu0 0.0
    %448 = vmatpush1.xpose.msra.mxu0 0.0
    %449 = vmatprep.subr.mxu0 0.0
    %450 = vmatpush1.xpose.msra.mxu0 0.0
    %451 = vmatprep.subr.mxu0 0.0
    %452 = vmatpush1.xpose.msra.mxu0 0.0
    %453 = vmatprep.subr.mxu0 0.0
    %454 = vmatpush1.xpose.msra.mxu0 0.0
    %455 = vmatprep.subr.mxu0 0.0
    %456 = vmatpush1.xpose.msra.mxu0 0.0
    %457 = vmatprep.subr.mxu0 0.0
    %458 = vmatpush1.xpose.msra.mxu0 0.0
    %459 = vmatprep.subr.mxu0 0.0
    %460 = vmatpush1.xpose.msra.mxu0 0.0
    %461 = vmatprep.subr.mxu0 0.0
    %462 = vmatpush1.xpose.msra.mxu0 0.0
    %463 = vmatprep.subr.mxu0 0.0
    %464 = vmatpush1.xpose.msra.mxu0 0.0
    %465 = vmatprep.subr.mxu0 0.0
    %466 = vmatpush1.xpose.msra.mxu0 0.0
    %467 = vmatprep.subr.mxu0 0.0
    %468 = vmatpush1.xpose.msra.mxu0 0.0
    %469 = vmatprep.subr.mxu0 0.0
    %470 = vmatpush1.xpose.msra.mxu0 0.0
    %471 = vmatprep.subr.mxu0 0.0
    %472 = vmatpush1.xpose.msra.mxu0 0.0
    %473 = vmatprep.subr.mxu0 0.0
    %474 = vmatpush1.xpose.msra.mxu0 0.0
    %475 = vmatprep.subr.mxu0 0.0
    %476 = vmatpush1.xpose.msra.mxu0 0.0
    %477 = vmatprep.subr.mxu0 0.0
    %478 = vmatpush1.xpose.msra.mxu0 0.0
    %479 = vmatprep.subr.mxu0 0.0
    %480 = vmatpush1.xpose.msra.mxu0 0.0
    %481 = vmatprep.subr.mxu0 0.0
    %482 = vmatpush1.xpose.msra.mxu0 0.0
    %483 = vmatprep.subr.mxu0 0.0
    %484 = vmatpush1.xpose.msra.mxu0 0.0
    %485 = vmatprep.subr.mxu0 0.0
    %486 = vmatpush1.xpose.msra.mxu0 0.0
    %487 = vmatprep.subr.mxu0 0.0
    %488 = vmatpush1.xpose.msra.mxu0 0.0
    %489 = vmatprep.subr.mxu0 0.0
    %490 = vmatpush1.xpose.msra.mxu0 0.0
    %491 = vmatprep.subr.mxu0 0.0
    %492 = vmatpush1.xpose.msra.mxu0 0.0
    %493 = vmatprep.subr.mxu0 0.0
    %494 = vmatpush1.xpose.msra.mxu0 0.0
    %495 = vmatprep.subr.mxu0 0.0
    %496 = vmatpush1.xpose.msra.mxu0 0.0
    %497 = vmatprep.subr.mxu0 0.0
    %498 = vmatpush1.xpose.msra.mxu0 0.0
    %499 = vmatprep.mubr.f32.mxu0 0.0
    %500 = vmatmul.mubr.f32.gmra.mrb[0].mxu0 %v417
    %v501 = vpop.f32.mrb[0].mxu0
    %v502 = vadd.f32 0.0, %v501
    %v503 = vpop.f32.mrb[0].mxu0
    %504 = vmatprep.mubr.f32.mxu0 0.0
    %505 = vmatmul.mubr.f32.gmra.mrb[0].mxu0 %v422
    %v506 = vpop.f32.mrb[0].mxu0
    %v507 = vadd.f32 0.0, %v506
    %v508 = vpop.f32.mrb[0].mxu0
    %509 = vdwg.mxu0
    %510 = vmatprep.subr.mxu0 0.0
    %511 = vmatpush1.xpose.msra.mxu0 %v313
    %512 = vmatprep.subr.mxu0 0.0
    %513 = vmatpush1.xpose.msra.mxu0 %v318
    %514 = vmatprep.subr.mxu0 0.0
    %515 = vmatpush1.xpose.msra.mxu0 0.0
    %516 = vmatprep.subr.mxu0 0.0
    %517 = vmatpush1.xpose.msra.mxu0 0.0
    %518 = vmatprep.subr.mxu0 0.0
    %519 = vmatpush1.xpose.msra.mxu0 0.0
    %520 = vmatprep.subr.mxu0 0.0
    %521 = vmatpush1.xpose.msra.mxu0 0.0
    %522 = vmatprep.subr.mxu0 0.0
    %523 = vmatpush1.xpose.msra.mxu0 0.0
    %524 = vmatprep.subr.mxu0 0.0
    %525 = vmatpush1.xpose.msra.mxu0 0.0
    %526 = vmatprep.subr.mxu0 0.0
    %527 = vmatpush1.xpose.msra.mxu0 0.0
    %528 = vmatprep.subr.mxu0 0.0
    %529 = vmatpush1.xpose.msra.mxu0 0.0
    %530 = vmatprep.subr.mxu0 0.0
    %531 = vmatpush1.xpose.msra.mxu0 0.0
    %532 = vmatprep.subr.mxu0 0.0
    %533 = vmatpush1.xpose.msra.mxu0 0.0
    %534 = vmatprep.subr.mxu0 0.0
    %535 = vmatpush1.xpose.msra.mxu0 0.0
    %536 = vmatprep.subr.mxu0 0.0
    %537 = vmatpush1.xpose.msra.mxu0 0.0
    %538 = vmatprep.subr.mxu0 0.0
    %539 = vmatpush1.xpose.msra.mxu0 0.0
    %540 = vmatprep.subr.mxu0 0.0
    %541 = vmatpush1.xpose.msra.mxu0 0.0
    %542 = vmatprep.subr.mxu0 0.0
    %543 = vmatpush1.xpose.msra.mxu0 0.0
    %544 = vmatprep.subr.mxu0 0.0
    %545 = vmatpush1.xpose.msra.mxu0 0.0
    %546 = vmatprep.subr.mxu0 0.0
    %547 = vmatpush1.xpose.msra.mxu0 0.0
    %548 = vmatprep.subr.mxu0 0.0
    %549 = vmatpush1.xpose.msra.mxu0 0.0
    %550 = vmatprep.subr.mxu0 0.0
    %551 = vmatpush1.xpose.msra.mxu0 0.0
    %552 = vmatprep.subr.mxu0 0.0
    %553 = vmatpush1.xpose.msra.mxu0 0.0
    %554 = vmatprep.subr.mxu0 0.0
    %555 = vmatpush1.xpose.msra.mxu0 0.0
    %556 = vmatprep.subr.mxu0 0.0
    %557 = vmatpush1.xpose.msra.mxu0 0.0
    %558 = vmatprep.subr.mxu0 0.0
    %559 = vmatpush1.xpose.msra.mxu0 0.0
    %560 = vmatprep.subr.mxu0 0.0
    %561 = vmatpush1.xpose.msra.mxu0 0.0
    %562 = vmatprep.subr.mxu0 0.0
    %563 = vmatpush1.xpose.msra.mxu0 0.0
    %564 = vmatprep.subr.mxu0 0.0
    %565 = vmatpush1.xpose.msra.mxu0 0.0
    %566 = vmatprep.subr.mxu0 0.0
    %567 = vmatpush1.xpose.msra.mxu0 0.0
    %568 = vmatprep.subr.mxu0 0.0
    %569 = vmatpush1.xpose.msra.mxu0 0.0
    %570 = vmatprep.subr.mxu0 0.0
    %571 = vmatpush1.xpose.msra.mxu0 0.0
    %572 = vmatprep.subr.mxu0 0.0
    %573 = vmatpush1.xpose.msra.mxu0 0.0
    %574 = vmatprep.mubr.f32.mxu0 0.0
    %575 = vmatmul.mubr.f32.gmra.mrb[0].mxu0 %v427
    %v576 = vpop.f32.mrb[0].mxu0
    %v577 = vadd.f32 0.0, %v576
    %v578 = vpop.f32.mrb[0].mxu0
    %579 = vmatprep.mubr.f32.mxu0 0.0
    %580 = vmatmul.mubr.f32.gmra.mrb[0].mxu0 %v432
    %v581 = vpop.f32.mrb[0].mxu0
    %v582 = vadd.f32 0.0, %v581
    %v583 = vpop.f32.mrb[0].mxu0
    %584 = vdwg.mxu0
    %vm585 = vcmask 130048
    %v586 = vsel %vm585, %v502, -inf
    %587 = vmax.xlane.f32.xlu0 %v586
    %v588 = vpop.xlane.xlu0 %587
    %v589 = vsel %vm585, %v507, -inf
    %590 = vmax.xlane.f32.xlu0 %v589
    %v591 = vpop.xlane.xlu0 %590
    %v592 = vsel %vm585, %v577, -inf
    %593 = vmax.xlane.f32.xlu0 %v592
    %v594 = vpop.xlane.xlu0 %593
    %v595 = vsel %vm585, %v582, -inf
    %596 = vmax.xlane.f32.xlu0 %v595
    %v597 = vpop.xlane.xlu0 %596
    %v598 = vsub.f32 %v502, %v588
    %v599 = vsub.f32 %v507, %v591
    %v600 = vsub.f32 %v577, %v594
    %v601 = vsub.f32 %v582, %v597
    %v602 = vmul.f32 %v598, 1.442695
    %v603 = vpow.pop %v602
    %v604 = vmul.f32 %v599, 1.442695
    %v605 = vpow.pop %v604
    %v606 = vmul.f32 %v600, 1.442695
    %v607 = vpow.pop %v606
    %v608 = vmul.f32 %v601, 1.442695
    %v609 = vpow.pop %v608
    %v610 = vsel %vm585, %v603, 0.0
    %611 = vadd.xlane.f32.xlu0 %v610
    %v612 = vpop.xlane.xlu0 %611
    %v613 = vsel %vm585, %v605, 0.0
    %614 = vadd.xlane.f32.xlu0 %v613
    %v615 = vpop.xlane.xlu0 %614
    %v616 = vsel %vm585, %v607, 0.0
    %617 = vadd.xlane.f32.xlu0 %v616
    %v618 = vpop.xlane.xlu0 %617
    %v619 = vsel %vm585, %v609, 0.0
    %620 = vadd.xlane.f32.xlu0 %v619
    %v621 = vpop.xlane.xlu0 %620
    %v622 = vrcp.pop %v612
    %v623 = vrcp.pop %v615
    %v624 = vrcp.pop %v618
    %v625 = vrcp.pop %v621
    %v626 = vmul.f32 %v603, %v622
    %v627 = vmul.f32 %v605, %v623
    %v628 = vmul.f32 %v607, %v624
    %v629 = vmul.f32 %v609, %v625
    %v631 = vsel %vm585, %v626, 0
    %v634 = vsel %vm585, %v627, 0
    %636 = vmatprep.subr.mxu0 0.0
    %637 = vmatpush1.msra.mxu0 %v189
    %638 = vmatprep.subr.mxu0 0.0
    %639 = vmatpush1.msra.mxu0 %v194
    %640 = vmatprep.subr.mxu0 0.0
    %641 = vmatpush1.msra.mxu0 0.0
    %642 = vmatprep.subr.mxu0 0.0
    %643 = vmatpush1.msra.mxu0 0.0
    %644 = vmatprep.subr.mxu0 0.0
    %645 = vmatpush1.msra.mxu0 0.0
    %646 = vmatprep.subr.mxu0 0.0
    %647 = vmatpush1.msra.mxu0 0.0
    %648 = vmatprep.subr.mxu0 0.0
    %649 = vmatpush1.msra.mxu0 0.0
    %650 = vmatprep.subr.mxu0 0.0
    %651 = vmatpush1.msra.mxu0 0.0
    %652 = vmatprep.subr.mxu0 0.0
    %653 = vmatpush1.msra.mxu0 0.0
    %654 = vmatprep.subr.mxu0 0.0
    %655 = vmatpush1.msra.mxu0 0.0
    %656 = vmatprep.subr.mxu0 0.0
    %657 = vmatpush1.msra.mxu0 0.0
    %658 = vmatprep.subr.mxu0 0.0
    %659 = vmatpush1.msra.mxu0 0.0
    %660 = vmatprep.subr.mxu0 0.0
    %661 = vmatpush1.msra.mxu0 0.0
    %662 = vmatprep.subr.mxu0 0.0
    %663 = vmatpush1.msra.mxu0 0.0
    %664 = vmatprep.subr.mxu0 0.0
    %665 = vmatpush1.msra.mxu0 0.0
    %666 = vmatprep.subr.mxu0 0.0
    %667 = vmatpush1.msra.mxu0 0.0
    %668 = vmatprep.subr.mxu0 0.0
    %669 = vmatpush1.msra.mxu0 0.0
    %670 = vmatprep.subr.mxu0 0.0
    %671 = vmatpush1.msra.mxu0 0.0
    %672 = vmatprep.subr.mxu0 0.0
    %673 = vmatpush1.msra.mxu0 0.0
    %674 = vmatprep.subr.mxu0 0.0
    %675 = vmatpush1.msra.mxu0 0.0
    %676 = vmatprep.subr.mxu0 0.0
    %677 = vmatpush1.msra.mxu0 0.0
    %678 = vmatprep.subr.mxu0 0.0
    %679 = vmatpush1.msra.mxu0 0.0
    %680 = vmatprep.subr.mxu0 0.0
    %681 = vmatpush1.msra.mxu0 0.0
    %682 = vmatprep.subr.mxu0 0.0
    %683 = vmatpush1.msra.mxu0 0.0
    %684 = vmatprep.subr.mxu0 0.0
    %685 = vmatpush1.msra.mxu0 0.0
    %686 = vmatprep.subr.mxu0 0.0
    %687 = vmatpush1.msra.mxu0 0.0
    %688 = vmatprep.subr.mxu0 0.0
    %689 = vmatpush1.msra.mxu0 0.0
    %690 = vmatprep.subr.mxu0 0.0
    %691 = vmatpush1.msra.mxu0 0.0
    %692 = vmatprep.subr.mxu0 0.0
    %693 = vmatpush1.msra.mxu0 0.0
    %694 = vmatprep.subr.mxu0 0.0
    %695 = vmatpush1.msra.mxu0 0.0
    %696 = vmatprep.subr.mxu0 0.0
    %697 = vmatpush1.msra.mxu0 0.0
    %698 = vmatprep.subr.mxu0 0.0
    %699 = vmatpush1.msra.mxu0 0.0
    %700 = vmatprep.mubr.f32.mxu0 0.0
    %701 = vmatmul.mubr.f32.gmra.mrb[0].mxu0 %v631
    %v702 = vpop.f32.mrb[0].mxu0
    %v703 = vadd.f32 0.0, %v702
    %v704 = vpop.f32.mrb[0].mxu0
    %705 = vmatprep.mubr.f32.mxu0 0.0
    %706 = vmatmul.mubr.f32.gmra.mrb[0].mxu0 %v634
    %v707 = vpop.f32.mrb[0].mxu0
    %v708 = vadd.f32 0.0, %v707
    %v709 = vpop.f32.mrb[0].mxu0
    %710 = vdwg.mxu0
    %v712 = vsel %vm585, %v628, 0
    %v715 = vsel %vm585, %v629, 0
    %717 = vmatprep.subr.mxu0 0.0
    %718 = vmatpush1.msra.mxu0 %v199
    %719 = vmatprep.subr.mxu0 0.0
    %720 = vmatpush1.msra.mxu0 %v204
    %721 = vmatprep.subr.mxu0 0.0
    %722 = vmatpush1.msra.mxu0 0.0
    %723 = vmatprep.subr.mxu0 0.0
    %724 = vmatpush1.msra.mxu0 0.0
    %725 = vmatprep.subr.mxu0 0.0
    %726 = vmatpush1.msra.mxu0 0.0
    %727 = vmatprep.subr.mxu0 0.0
    %728 = vmatpush1.msra.mxu0 0.0
    %729 = vmatprep.subr.mxu0 0.0
    %730 = vmatpush1.msra.mxu0 0.0
    %731 = vmatprep.subr.mxu0 0.0
    %732 = vmatpush1.msra.mxu0 0.0
    %733 = vmatprep.subr.mxu0 0.0
    %734 = vmatpush1.msra.mxu0 0.0
    %735 = vmatprep.subr.mxu0 0.0
    %736 = vmatpush1.msra.mxu0 0.0
    %737 = vmatprep.subr.mxu0 0.0
    %738 = vmatpush1.msra.mxu0 0.0
    %739 = vmatprep.subr.mxu0 0.0
    %740 = vmatpush1.msra.mxu0 0.0
    %741 = vmatprep.subr.mxu0 0.0
    %742 = vmatpush1.msra.mxu0 0.0
    %743 = vmatprep.subr.mxu0 0.0
    %744 = vmatpush1.msra.mxu0 0.0
    %745 = vmatprep.subr.mxu0 0.0
    %746 = vmatpush1.msra.mxu0 0.0
    %747 = vmatprep.subr.mxu0 0.0
    %748 = vmatpush1.msra.mxu0 0.0
    %749 = vmatprep.subr.mxu0 0.0
    %750 = vmatpush1.msra.mxu0 0.0
    %751 = vmatprep.subr.mxu0 0.0
    %752 = vmatpush1.msra.mxu0 0.0
    %753 = vmatprep.subr.mxu0 0.0
    %754 = vmatpush1.msra.mxu0 0.0
    %755 = vmatprep.subr.mxu0 0.0
    %756 = vmatpush1.msra.mxu0 0.0
    %757 = vmatprep.subr.mxu0 0.0
    %758 = vmatpush1.msra.mxu0 0.0
    %759 = vmatprep.subr.mxu0 0.0
    %760 = vmatpush1.msra.mxu0 0.0
    %761 = vmatprep.subr.mxu0 0.0
    %762 = vmatpush1.msra.mxu0 0.0
    %763 = vmatprep.subr.mxu0 0.0
    %764 = vmatpush1.msra.mxu0 0.0
    %765 = vmatprep.subr.mxu0 0.0
    %766 = vmatpush1.msra.mxu0 0.0
    %767 = vmatprep.subr.mxu0 0.0
    %768 = vmatpush1.msra.mxu0 0.0
    %769 = vmatprep.subr.mxu0 0.0
    %770 = vmatpush1.msra.mxu0 0.0
    %771 = vmatprep.subr.mxu0 0.0
    %772 = vmatpush1.msra.mxu0 0.0
    %773 = vmatprep.subr.mxu0 0.0
    %774 = vmatpush1.msra.mxu0 0.0
    %775 = vmatprep.subr.mxu0 0.0
    %776 = vmatpush1.msra.mxu0 0.0
    %777 = vmatprep.subr.mxu0 0.0
    %778 = vmatpush1.msra.mxu0 0.0
    %779 = vmatprep.subr.mxu0 0.0
    %780 = vmatpush1.msra.mxu0 0.0
    %781 = vmatprep.mubr.f32.mxu0 0.0
    %782 = vmatmul.mubr.f32.gmra.mrb[0].mxu0 %v712
    %v783 = vpop.f32.mrb[0].mxu0
    %v784 = vadd.f32 0.0, %v783
    %v785 = vpop.f32.mrb[0].mxu0
    %786 = vmatprep.mubr.f32.mxu0 0.0
    %787 = vmatmul.mubr.f32.gmra.mrb[0].mxu0 %v715
    %v788 = vpop.f32.mrb[0].mxu0
    %v789 = vadd.f32 0.0, %v788
    %v790 = vpop.f32.mrb[0].mxu0
    %791 = vdwg.mxu0
    %v792 = vld [vmem:[#allocation10] sm:$0xff]
    %v793 = vld [vmem:[#allocation10 + $0x8] sm:$0xff]
    %v794 = vld [vmem:[#allocation10 + $0x10] sm:$0xff]
    %v795 = vld [vmem:[#allocation10 + $0x18] sm:$0xff]
    %v796 = vld [vmem:[#allocation10 + $0x20] sm:$0xff]
    %v797 = vld [vmem:[#allocation10 + $0x28] sm:$0xff]
    %v798 = vld [vmem:[#allocation10 + $0x30] sm:$0xff]
    %v799 = vld [vmem:[#allocation10 + $0x38] sm:$0xff]
    %v800 = vld [vmem:[#allocation10 + $0x40] sm:$0xff]
    %v801 = vld [vmem:[#allocation10 + $0x48] sm:$0xff]
    %v802 = vld [vmem:[#allocation10 + $0x50] sm:$0xff]
    %v803 = vld [vmem:[#allocation10 + $0x58] sm:$0xff]
    %v804 = vld [vmem:[#allocation10 + $0x60] sm:$0xff]
    %v805 = vld [vmem:[#allocation10 + $0x68] sm:$0xff]
    %v806 = vld [vmem:[#allocation10 + $0x70] sm:$0xff]
    %v807 = vld [vmem:[#allocation10 + $0x78] sm:$0xff]
    %v808 = vld [vmem:[%s6] sm:$0x1]
    %v810 = vlaneseq
    %v811 = vshrl.u32 %v810, 7
    %v812 = vsub.s32 0, %v811
    %v813 = vrot.slane %v808, %v812
    %815 = vmatprep.subr.mxu0 0.0
    %816 = vmatpush1.msra.mxu0 %v792
    %817 = vmatprep.subr.mxu0 0.0
    %818 = vmatpush1.msra.mxu0 %v793
    %819 = vmatprep.subr.mxu0 0.0
    %820 = vmatpush1.msra.mxu0 %v794
    %821 = vmatprep.subr.mxu0 0.0
    %822 = vmatpush1.msra.mxu0 %v795
    %823 = vmatprep.subr.mxu0 0.0
    %824 = vmatpush1.msra.mxu0 %v796
    %825 = vmatprep.subr.mxu0 0.0
    %826 = vmatpush1.msra.mxu0 %v797
    %827 = vmatprep.subr.mxu0 0.0
    %828 = vmatpush1.msra.mxu0 %v798
    %829 = vmatprep.subr.mxu0 0.0
    %830 = vmatpush1.msra.mxu0 %v799
    %831 = vmatprep.subr.mxu0 0.0
    %832 = vmatpush1.msra.mxu0 %v800
    %833 = vmatprep.subr.mxu0 0.0
    %834 = vmatpush1.msra.mxu0 %v801
    %835 = vmatprep.subr.mxu0 0.0
    %836 = vmatpush1.msra.mxu0 %v802
    %837 = vmatprep.subr.mxu0 0.0
    %838 = vmatpush1.msra.mxu0 %v803
    %839 = vmatprep.subr.mxu0 0.0
    %840 = vmatpush1.msra.mxu0 %v804
    %841 = vmatprep.subr.mxu0 0.0
    %842 = vmatpush1.msra.mxu0 %v805
    %843 = vmatprep.subr.mxu0 0.0
    %844 = vmatpush1.msra.mxu0 %v806
    %845 = vmatprep.subr.mxu0 0.0
    %846 = vmatpush1.msra.mxu0 %v807
    %847 = vmatprep.subr.mxu0 0.0
    %848 = vmatpush1.msra.mxu0 0.0
    %849 = vmatprep.subr.mxu0 0.0
    %850 = vmatpush1.msra.mxu0 0.0
    %851 = vmatprep.subr.mxu0 0.0
    %852 = vmatpush1.msra.mxu0 0.0
    %853 = vmatprep.subr.mxu0 0.0
    %854 = vmatpush1.msra.mxu0 0.0
    %855 = vmatprep.subr.mxu0 0.0
    %856 = vmatpush1.msra.mxu0 0.0
    %857 = vmatprep.subr.mxu0 0.0
    %858 = vmatpush1.msra.mxu0 0.0
    %859 = vmatprep.subr.mxu0 0.0
    %860 = vmatpush1.msra.mxu0 0.0
    %861 = vmatprep.subr.mxu0 0.0
    %862 = vmatpush1.msra.mxu0 0.0
    %863 = vmatprep.subr.mxu0 0.0
    %864 = vmatpush1.msra.mxu0 0.0
    %865 = vmatprep.subr.mxu0 0.0
    %866 = vmatpush1.msra.mxu0 0.0
    %867 = vmatprep.subr.mxu0 0.0
    %868 = vmatpush1.msra.mxu0 0.0
    %869 = vmatprep.subr.mxu0 0.0
    %870 = vmatpush1.msra.mxu0 0.0
    %871 = vmatprep.subr.mxu0 0.0
    %872 = vmatpush1.msra.mxu0 0.0
    %873 = vmatprep.subr.mxu0 0.0
    %874 = vmatpush1.msra.mxu0 0.0
    %875 = vmatprep.subr.mxu0 0.0
    %876 = vmatpush1.msra.mxu0 0.0
    %877 = vmatprep.subr.mxu0 0.0
    %878 = vmatpush1.msra.mxu0 0.0
    %879 = vmatprep.mubr.f32.mxu0 0.0
    %880 = vmatmul.mubr.f32.gmra.mrb[0].mxu0 %v703
    %v881 = vpop.f32.mrb[0].mxu0
    %v882 = vadd.f32 %v813, %v881
    %v883 = vpop.f32.mrb[0].mxu0
    %884 = vmatprep.mubr.f32.mxu0 0.0
    %885 = vmatmul.mubr.f32.gmra.mrb[0].mxu0 %v708
    %v886 = vpop.f32.mrb[0].mxu0
    %v887 = vadd.f32 %v813, %v886
    %v888 = vpop.f32.mrb[0].mxu0
    %889 = vmatprep.mubr.f32.mxu0 0.0
    %890 = vmatmul.mubr.f32.gmra.mrb[0].mxu0 %v784
    %v891 = vpop.f32.mrb[0].mxu0
    %v892 = vadd.f32 %v813, %v891
    %v893 = vpop.f32.mrb[0].mxu0
    %894 = vmatprep.mubr.f32.mxu0 0.0
    %895 = vmatmul.mubr.f32.gmra.mrb[0].mxu0 %v789
    %v896 = vpop.f32.mrb[0].mxu0
    %v897 = vadd.f32 %v813, %v896
    %v898 = vpop.f32.mrb[0].mxu0
    %899 = vdwg.mxu0
    %900 = vst [vmem:[#allocation11] sm:$0xff] %v882
    %901 = vst [vmem:[#allocation11 + $0x8] sm:$0xff] %v887
    %902 = vst [vmem:[#allocation11 + $0x10] sm:$0xff] %v892
    %903 = vst [vmem:[#allocation11 + $0x18] sm:$0xff] %v897
    // Predicated region
    $region50: #{tpu_custom_call.1} parent=1 // pred_check
      _
    $region51: #{tpu_custom_call.1} parent=1 // pred_check_branch
      %905 = sbr.rel (0) target = $region53
    $region52: #{tpu_custom_call.1} parent=1 // pred_region
      %s907 = ssub.s32 512, 512
      %908 = vsyncadd [#allocation4], %s907
      %s909 = sshll.u32 [#allocation11], 4
      %s910 = int_to_ptr.vmem [resolvable:$true] %s909
      %915 = dma.vmem_to_hbm [thread:$0]  %s910, 512, %s7, [#allocation4], 128, 128, 8
    $region53: #{tpu_custom_call.1} parent=1 // pred_fallthru
      _
    // Predicated region
    $region54: #{tpu_custom_call.1} parent=1 // pred_check
      _
    $region55: #{tpu_custom_call.1} parent=1 // pred_check_branch
      %917 = sbr.rel (0) target = $region57
    $region56: #{tpu_custom_call.1} parent=1 // pred_region
      %918 = dma.done [#allocation4], 512
    $region57: #{tpu_custom_call.1} parent=1 // pred_fallthru
      _
    %919 = vsyncpa [#allocation3], 1
    %920 = vsyncpa [#allocation6], 1
    %921 = vsyncpa [#allocation9], 1
    %922 = vsyncpa [#allocation4], 1

// kernel: tpu_custom_call.1
$region0: #{tpu_custom_call.1}
  #allocation0 [shape = 'u32[]', space=smem, size = 0x4, offset = 0x4, fixed_abs, tag = 'smem constant byte address 0x4 - core index']
  #allocation1 [shape = 'u32[144,128]{1,0:T(1,128)}', space=vmem, size = 0x12000, scoped, tag = 'internal scratch']
  %s0 = inlined_call_operand.hbm [shape: f32[2,16,128], index: 0, kind: input, shape index: {}]
  %s1 = inlined_call_operand.hbm [shape: f32[2,16,128], index: 1, kind: input, shape index: {}]
  %s2 = inlined_call_operand.hbm [shape: f32[2,16,128], index: 2, kind: input, shape index: {}]
  %s3 = inlined_call_operand.hbm [shape: f32[3,128,128], index: 3, kind: input, shape index: {}]
  %s4 = inlined_call_operand.vmem [shape: f32[3,1,128], index: 4, kind: input, shape index: {}]
  %s5 = inlined_call_operand.hbm [shape: f32[128,128], index: 5, kind: input, shape index: {}]
  %s6 = inlined_call_operand.vmem [shape: f32[1,128], index: 6, kind: input, shape index: {}]
  %s7 = inlined_call_operand.hbm [shape: f32[2,16,128], index: 7, kind: output, shape index: {}]
  %s8 = sld [smem:[#allocation0]]
  $region58: #{tpu_custom_call.1} parent=0
    _
  %s10 = ssub.s32 1, %s8
  %s11 = scalar_select 0, %s10, %s8
  $region1: #{tpu_custom_call.1} parent=0
    #allocation2 [shape = 'u8[16384]{0}', space=vmem, size = 0x4000, scoped, tag = 'input window, operand 0, single buffered']
    #allocation3 [shape = 's32[1]{0}', space=sflag, size = 0x4, scoped, tag = 'scoped memory for tpu_custom_call.1']
    #allocation4 [shape = 's32[1]{0}', space=sflag, size = 0x4, scoped, tag = 'scoped memory for tpu_custom_call.1']
    #allocation5 [shape = 'u8[16384]{0}', space=vmem, size = 0x4000, scoped, tag = 'input window, operand 1, single buffered']
    #allocation6 [shape = 's32[1]{0}', space=sflag, size = 0x4, scoped, tag = 'scoped memory for tpu_custom_call.1']
    #allocation7 [shape = 'u8[16384]{0}', space=vmem, size = 0x4000, scoped, tag = 'input window, operand 2, single buffered']
    #allocation8 [shape = 'u8[196608]{0}', space=vmem, size = 0x30000, scoped, tag = 'input window, operand 3, single buffered']
    #allocation9 [shape = 's32[1]{0}', space=sflag, size = 0x4, scoped, tag = 'scoped memory for tpu_custom_call.1']
    #allocation10 [shape = 'u8[65536]{0}', space=vmem, size = 0x10000, scoped, tag = 'input window, operand 5, single buffered']
    #allocation11 [shape = 'u8[16384]{0}', space=vmem, size = 0x4000, scoped, tag = 'output window, operand 0, single buffered']
    %12 = vsyncpa [#allocation3], 0
    %13 = vsyncpa [#allocation6], 0
    %14 = vsyncpa [#allocation9], 0
    %15 = vsyncpa [#allocation4], 0
    // Predicated region
    $region2: #{tpu_custom_call.1} parent=1 // pred_check
      _
    $region3: #{tpu_custom_call.1} parent=1 // pred_check_branch
      %17 = sbr.rel (0) target = $region5
    $region4: #{tpu_custom_call.1} parent=1 // pred_region
      %s19 = ssub.s32 512, 512
      %20 = vsyncadd [#allocation3], %s19
      %s21 = sshll.u32 [#allocation2], 4
      %s22 = int_to_ptr.vmem [resolvable:$true] %s21
      %27 = dma.hbm_to_vmem [thread:$0]  %s0, 512, %s22, [#allocation3], 128, 128, 8
    $region5: #{tpu_custom_call.1} parent=1 // pred_fallthru
      _
    // Predicated region
    $region6: #{tpu_custom_call.1} parent=1 // pred_check
      _
    $region7: #{tpu_custom_call.1} parent=1 // pred_check_branch
      %29 = sbr.rel (0) target = $region9
    $region8: #{tpu_custom_call.1} parent=1 // pred_region
      %s31 = ssub.s32 512, 512
      %32 = vsyncadd [#allocation6], %s31
      %s33 = sshll.u32 [#allocation5], 4
      %s34 = int_to_ptr.vmem [resolvable:$true] %s33
      %39 = dma.hbm_to_vmem [thread:$0]  %s1, 512, %s34, [#allocation6], 128, 128, 8
    $region9: #{tpu_custom_call.1} parent=1 // pred_fallthru
      _
    // Predicated region
    $region10: #{tpu_custom_call.1} parent=1 // pred_check
      _
    $region11: #{tpu_custom_call.1} parent=1 // pred_check_branch
      %41 = sbr.rel (0) target = $region13
    $region12: #{tpu_custom_call.1} parent=1 // pred_region
      %s43 = ssub.s32 512, 512
      %44 = vsyncadd [#allocation6], %s43
      %s45 = sshll.u32 [#allocation7], 4
      %s46 = int_to_ptr.vmem [resolvable:$true] %s45
      %51 = dma.hbm_to_vmem [thread:$0]  %s2, 512, %s46, [#allocation6], 128, 128, 8
    $region13: #{tpu_custom_call.1} parent=1 // pred_fallthru
      _
    // Predicated region
    $region14: #{tpu_custom_call.1} parent=1 // pred_check
      _
    $region15: #{tpu_custom_call.1} parent=1 // pred_check_branch
      %53 = sbr.rel (0) target = $region17
    $region16: #{tpu_custom_call.1} parent=1 // pred_region
      %s55 = ssub.s32 6144, 6144
      %56 = vsyncadd [#allocation9], %s55
      %s57 = sshll.u32 [#allocation8], 4
      %s58 = int_to_ptr.vmem [resolvable:$true] %s57
      %63 = dma.hbm_to_vmem [thread:$0]  %s3, 6144, %s58, [#allocation9], 128, 128, 8
    $region17: #{tpu_custom_call.1} parent=1 // pred_fallthru
      _
    // Predicated region
    $region18: #{tpu_custom_call.1} parent=1 // pred_check
      _
    $region19: #{tpu_custom_call.1} parent=1 // pred_check_branch
      %65 = sbr.rel (0) target = $region21
    $region20: #{tpu_custom_call.1} parent=1 // pred_region
      _
    $region21: #{tpu_custom_call.1} parent=1 // pred_fallthru
      _
    // Predicated region
    $region22: #{tpu_custom_call.1} parent=1 // pred_check
      _
    $region23: #{tpu_custom_call.1} parent=1 // pred_check_branch
      %67 = sbr.rel (0) target = $region25
    $region24: #{tpu_custom_call.1} parent=1 // pred_region
      %s69 = ssub.s32 2048, 2048
      %70 = vsyncadd [#allocation9], %s69
      %s71 = sshll.u32 [#allocation10], 4
      %s72 = int_to_ptr.vmem [resolvable:$true] %s71
      %77 = dma.hbm_to_vmem [thread:$0]  %s5, 2048, %s72, [#allocation9], 128, 128, 8
    $region25: #{tpu_custom_call.1} parent=1 // pred_fallthru
      _
    // Predicated region
    $region26: #{tpu_custom_call.1} parent=1 // pred_check
      _
    $region27: #{tpu_custom_call.1} parent=1 // pred_check_branch
      %79 = sbr.rel (0) target = $region29
    $region28: #{tpu_custom_call.1} parent=1 // pred_region
      _
    $region29: #{tpu_custom_call.1} parent=1 // pred_fallthru
      _
    // Predicated region
    $region30: #{tpu_custom_call.1} parent=1 // pred_check
      _
    $region31: #{tpu_custom_call.1} parent=1 // pred_check_branch
      %81 = sbr.rel (0) target = $region33
    $region32: #{tpu_custom_call.1} parent=1 // pred_region
      %82 = dma.done [#allocation3], 512
    $region33: #{tpu_custom_call.1} parent=1 // pred_fallthru
      _
    // Predicated region
    $region34: #{tpu_custom_call.1} parent=1 // pred_check
      _
    $region35: #{tpu_custom_call.1} parent=1 // pred_check_branch
      %84 = sbr.rel (0) target = $region37
    $region36: #{tpu_custom_call.1} parent=1 // pred_region
      %85 = dma.done [#allocation6], 512
    $region37: #{tpu_custom_call.1} parent=1 // pred_fallthru
      _
    // Predicated region
    $region38: #{tpu_custom_call.1} parent=1 // pred_check
      _
    $region39: #{tpu_custom_call.1} parent=1 // pred_check_branch
      %87 = sbr.rel (0) target = $region41
    $region40: #{tpu_custom_call.1} parent=1 // pred_region
      %88 = dma.done [#allocation6], 512
    $region41: #{tpu_custom_call.1} parent=1 // pred_fallthru
      _
    // Predicated region
    $region42: #{tpu_custom_call.1} parent=1 // pred_check
      _
    $region43: #{tpu_custom_call.1} parent=1 // pred_check_branch
      %90 = sbr.rel (0) target = $region45
    $region44: #{tpu_custom_call.1} parent=1 // pred_region
      %91 = dma.done [#allocation9], 6144
    $region45: #{tpu_custom_call.1} parent=1 // pred_fallthru
      _
    // Predicated region
    $region46: #{tpu_custom_call.1} parent=1 // pred_check
      _
    $region47: #{tpu_custom_call.1} parent=1 // pred_check_branch
      %93 = sbr.rel (0) target = $region49
    $region48: #{tpu_custom_call.1} parent=1 // pred_region
      %94 = dma.done [#allocation9], 2048
    $region49: #{tpu_custom_call.1} parent=1 // pred_fallthru
      _
    %v95 = vld [vmem:[#allocation2] sm:$0xff]
    %v96 = vld [vmem:[#allocation2 + $0x8] sm:$0xff]
    %v97 = vld [vmem:[#allocation2 + $0x10] sm:$0xff]
    %v98 = vld [vmem:[#allocation2 + $0x18] sm:$0xff]
    %v99 = vld [vmem:[#allocation8] sm:$0xff]
    %v100 = vld [vmem:[#allocation8 + $0x8] sm:$0xff]
    %v101 = vld [vmem:[#allocation8 + $0x10] sm:$0xff]
    %v102 = vld [vmem:[#allocation8 + $0x18] sm:$0xff]
    %v103 = vld [vmem:[#allocation8 + $0x20] sm:$0xff]
    %v104 = vld [vmem:[#allocation8 + $0x28] sm:$0xff]
    %v105 = vld [vmem:[#allocation8 + $0x30] sm:$0xff]
    %v106 = vld [vmem:[#allocation8 + $0x38] sm:$0xff]
    %v107 = vld [vmem:[#allocation8 + $0x40] sm:$0xff]
    %v108 = vld [vmem:[#allocation8 + $0x48] sm:$0xff]
    %v109 = vld [vmem:[#allocation8 + $0x50] sm:$0xff]
    %v110 = vld [vmem:[#allocation8 + $0x58] sm:$0xff]
    %v111 = vld [vmem:[#allocation8 + $0x60] sm:$0xff]
    %v112 = vld [vmem:[#allocation8 + $0x68] sm:$0xff]
    %v113 = vld [vmem:[#allocation8 + $0x70] sm:$0xff]
    %v114 = vld [vmem:[#allocation8 + $0x78] sm:$0xff]
    %v115 = vld [vmem:[%s4] sm:$0x1]
    %v117 = vlaneseq
    %v118 = vshrl.u32 %v117, 7
    %v119 = vsub.s32 0, %v118
    %v120 = vrot.slane %v115, %v119
    %122 = vmatprep.subr.mxu0 0.0
    %123 = vmatpush1.msra.mxu0 %v99
    %124 = vmatprep.subr.mxu0 0.0
    %125 = vmatpush1.msra.mxu0 %v100
    %126 = vmatprep.subr.mxu0 0.0
    %127 = vmatpush1.msra.mxu0 %v101
    %128 = vmatprep.subr.mxu0 0.0
    %129 = vmatpush1.msra.mxu0 %v102
    %130 = vmatprep.subr.mxu0 0.0
    %131 = vmatpush1.msra.mxu0 %v103
    %132 = vmatprep.subr.mxu0 0.0
    %133 = vmatpush1.msra.mxu0 %v104
    %134 = vmatprep.subr.mxu0 0.0
    %135 = vmatpush1.msra.mxu0 %v105
    %136 = vmatprep.subr.mxu0 0.0
    %137 = vmatpush1.msra.mxu0 %v106
    %138 = vmatprep.subr.mxu0 0.0
    %139 = vmatpush1.msra.mxu0 %v107
    %140 = vmatprep.subr.mxu0 0.0
    %141 = vmatpush1.msra.mxu0 %v108
    %142 = vmatprep.subr.mxu0 0.0
    %143 = vmatpush1.msra.mxu0 %v109
    %144 = vmatprep.subr.mxu0 0.0
    %145 = vmatpush1.msra.mxu0 %v110
    %146 = vmatprep.subr.mxu0 0.0
    %147 = vmatpush1.msra.mxu0 %v111
    %148 = vmatprep.subr.mxu0 0.0
    %149 = vmatpush1.msra.mxu0 %v112
    %150 = vmatprep.subr.mxu0 0.0
    %151 = vmatpush1.msra.mxu0 %v113
    %152 = vmatprep.subr.mxu0 0.0
    %153 = vmatpush1.msra.mxu0 %v114
    %154 = vmatprep.subr.mxu0 0.0
    %155 = vmatpush1.msra.mxu0 0.0
    %156 = vmatprep.subr.mxu0 0.0
    %157 = vmatpush1.msra.mxu0 0.0
    %158 = vmatprep.subr.mxu0 0.0
    %159 = vmatpush1.msra.mxu0 0.0
    %160 = vmatprep.subr.mxu0 0.0
    %161 = vmatpush1.msra.mxu0 0.0
    %162 = vmatprep.subr.mxu0 0.0
    %163 = vmatpush1.msra.mxu0 0.0
    %164 = vmatprep.subr.mxu0 0.0
    %165 = vmatpush1.msra.mxu0 0.0
    %166 = vmatprep.subr.mxu0 0.0
    %167 = vmatpush1.msra.mxu0 0.0
    %168 = vmatprep.subr.mxu0 0.0
    %169 = vmatpush1.msra.mxu0 0.0
    %170 = vmatprep.subr.mxu0 0.0
    %171 = vmatpush1.msra.mxu0 0.0
    %172 = vmatprep.subr.mxu0 0.0
    %173 = vmatpush1.msra.mxu0 0.0
    %174 = vmatprep.subr.mxu0 0.0
    %175 = vmatpush1.msra.mxu0 0.0
    %176 = vmatprep.subr.mxu0 0.0
    %177 = vmatpush1.msra.mxu0 0.0
    %178 = vmatprep.subr.mxu0 0.0
    %179 = vmatpush1.msra.mxu0 0.0
    %180 = vmatprep.subr.mxu0 0.0
    %181 = vmatpush1.msra.mxu0 0.0
    %182 = vmatprep.subr.mxu0 0.0
    %183 = vmatpush1.msra.mxu0 0.0
    %184 = vmatprep.subr.mxu0 0.0
    %185 = vmatpush1.msra.mxu0 0.0
    %186 = vmatprep.mubr.f32.mxu0 0.0
    %187 = vmatmul.mubr.f32.gmra.mrb[0].mxu0 %v95
    %v188 = vpop.f32.mrb[0].mxu0
    %v189 = vadd.f32 %v120, %v188
    %v190 = vpop.f32.mrb[0].mxu0
    %191 = vmatprep.mubr.f32.mxu0 0.0
    %192 = vmatmul.mubr.f32.gmra.mrb[0].mxu0 %v96
    %v193 = vpop.f32.mrb[0].mxu0
    %v194 = vadd.f32 %v120, %v193
    %v195 = vpop.f32.mrb[0].mxu0
    %196 = vmatprep.mubr.f32.mxu0 0.0
    %197 = vmatmul.mubr.f32.gmra.mrb[0].mxu0 %v97
    %v198 = vpop.f32.mrb[0].mxu0
    %v199 = vadd.f32 %v120, %v198
    %v200 = vpop.f32.mrb[0].mxu0
    %201 = vmatprep.mubr.f32.mxu0 0.0
    %202 = vmatmul.mubr.f32.gmra.mrb[0].mxu0 %v98
    %v203 = vpop.f32.mrb[0].mxu0
    %v204 = vadd.f32 %v120, %v203
    %v205 = vpop.f32.mrb[0].mxu0
    %206 = vdwg.mxu0
    %v207 = vld [vmem:[#allocation5] sm:$0xff]
    %v208 = vld [vmem:[#allocation5 + $0x8] sm:$0xff]
    %v209 = vld [vmem:[#allocation5 + $0x10] sm:$0xff]
    %v210 = vld [vmem:[#allocation5 + $0x18] sm:$0xff]
    %s211 = scalar_lea.vmem [#allocation8], 128
    %v212 = vld [vmem:[%s211] sm:$0xff]
    %v213 = vld [vmem:[%s211 + $0x8] sm:$0xff]
    %v214 = vld [vmem:[%s211 + $0x10] sm:$0xff]
    %v215 = vld [vmem:[%s211 + $0x18] sm:$0xff]
    %v216 = vld [vmem:[%s211 + $0x20] sm:$0xff]
    %v217 = vld [vmem:[%s211 + $0x28] sm:$0xff]
    %v218 = vld [vmem:[%s211 + $0x30] sm:$0xff]
    %v219 = vld [vmem:[%s211 + $0x38] sm:$0xff]
    %v220 = vld [vmem:[%s211 + $0x40] sm:$0xff]
    %v221 = vld [vmem:[%s211 + $0x48] sm:$0xff]
    %v222 = vld [vmem:[%s211 + $0x50] sm:$0xff]
    %v223 = vld [vmem:[%s211 + $0x58] sm:$0xff]
    %v224 = vld [vmem:[%s211 + $0x60] sm:$0xff]
    %v225 = vld [vmem:[%s211 + $0x68] sm:$0xff]
    %v226 = vld [vmem:[%s211 + $0x70] sm:$0xff]
    %v227 = vld [vmem:[%s211 + $0x78] sm:$0xff]
    %s228 = scalar_lea.vmem %s4, 1
    %v229 = vld [vmem:[%s228] sm:$0x1]
    %v231 = vlaneseq
    %v232 = vshrl.u32 %v231, 7
    %v233 = vsub.s32 0, %v232
    %v234 = vrot.slane %v229, %v233
    %236 = vmatprep.subr.mxu0 0.0
    %237 = vmatpush1.msra.mxu0 %v212
    %238 = vmatprep.subr.mxu0 0.0
    %239 = vmatpush1.msra.mxu0 %v213
    %240 = vmatprep.subr.mxu0 0.0
    %241 = vmatpush1.msra.mxu0 %v214
    %242 = vmatprep.subr.mxu0 0.0
    %243 = vmatpush1.msra.mxu0 %v215
    %244 = vmatprep.subr.mxu0 0.0
    %245 = vmatpush1.msra.mxu0 %v216
    %246 = vmatprep.subr.mxu0 0.0
    %247 = vmatpush1.msra.mxu0 %v217
    %248 = vmatprep.subr.mxu0 0.0
    %249 = vmatpush1.msra.mxu0 %v218
    %250 = vmatprep.subr.mxu0 0.0
    %251 = vmatpush1.msra.mxu0 %v219
    %252 = vmatprep.subr.mxu0 0.0
    %253 = vmatpush1.msra.mxu0 %v220
    %254 = vmatprep.subr.mxu0 0.0
    %255 = vmatpush1.msra.mxu0 %v221
    %256 = vmatprep.subr.mxu0 0.0
    %257 = vmatpush1.msra.mxu0 %v222
    %258 = vmatprep.subr.mxu0 0.0
    %259 = vmatpush1.msra.mxu0 %v223
    %260 = vmatprep.subr.mxu0 0.0
    %261 = vmatpush1.msra.mxu0 %v224
    %262 = vmatprep.subr.mxu0 0.0
    %263 = vmatpush1.msra.mxu0 %v225
    %264 = vmatprep.subr.mxu0 0.0
    %265 = vmatpush1.msra.mxu0 %v226
    %266 = vmatprep.subr.mxu0 0.0
    %267 = vmatpush1.msra.mxu0 %v227
    %268 = vmatprep.subr.mxu0 0.0
    %269 = vmatpush1.msra.mxu0 0.0
    %270 = vmatprep.subr.mxu0 0.0
    %271 = vmatpush1.msra.mxu0 0.0
    %272 = vmatprep.subr.mxu0 0.0
    %273 = vmatpush1.msra.mxu0 0.0
    %274 = vmatprep.subr.mxu0 0.0
    %275 = vmatpush1.msra.mxu0 0.0
    %276 = vmatprep.subr.mxu0 0.0
    %277 = vmatpush1.msra.mxu0 0.0
    %278 = vmatprep.subr.mxu0 0.0
    %279 = vmatpush1.msra.mxu0 0.0
    %280 = vmatprep.subr.mxu0 0.0
    %281 = vmatpush1.msra.mxu0 0.0
    %282 = vmatprep.subr.mxu0 0.0
    %283 = vmatpush1.msra.mxu0 0.0
    %284 = vmatprep.subr.mxu0 0.0
    %285 = vmatpush1.msra.mxu0 0.0
    %286 = vmatprep.subr.mxu0 0.0
    %287 = vmatpush1.msra.mxu0 0.0
    %288 = vmatprep.subr.mxu0 0.0
    %289 = vmatpush1.msra.mxu0 0.0
    %290 = vmatprep.subr.mxu0 0.0
    %291 = vmatpush1.msra.mxu0 0.0
    %292 = vmatprep.subr.mxu0 0.0
    %293 = vmatpush1.msra.mxu0 0.0
    %294 = vmatprep.subr.mxu0 0.0
    %295 = vmatpush1.msra.mxu0 0.0
    %296 = vmatprep.subr.mxu0 0.0
    %297 = vmatpush1.msra.mxu0 0.0
    %298 = vmatprep.subr.mxu0 0.0
    %299 = vmatpush1.msra.mxu0 0.0
    %300 = vmatprep.mubr.f32.mxu0 0.0
    %301 = vmatmul.mubr.f32.gmra.mrb[0].mxu0 %v207
    %v302 = vpop.f32.mrb[0].mxu0
    %v303 = vadd.f32 %v234, %v302
    %v304 = vpop.f32.mrb[0].mxu0
    %305 = vmatprep.mubr.f32.mxu0 0.0
    %306 = vmatmul.mubr.f32.gmra.mrb[0].mxu0 %v208
    %v307 = vpop.f32.mrb[0].mxu0
    %v308 = vadd.f32 %v234, %v307
    %v309 = vpop.f32.mrb[0].mxu0
    %310 = vmatprep.mubr.f32.mxu0 0.0
    %311 = vmatmul.mubr.f32.gmra.mrb[0].mxu0 %v209
    %v312 = vpop.f32.mrb[0].mxu0
    %v313 = vadd.f32 %v234, %v312
    %v314 = vpop.f32.mrb[0].mxu0
    %315 = vmatprep.mubr.f32.mxu0 0.0
    %316 = vmatmul.mubr.f32.gmra.mrb[0].mxu0 %v210
    %v317 = vpop.f32.mrb[0].mxu0
    %v318 = vadd.f32 %v234, %v317
    %v319 = vpop.f32.mrb[0].mxu0
    %320 = vdwg.mxu0
    %v321 = vld [vmem:[#allocation7] sm:$0xff]
    %v322 = vld [vmem:[#allocation7 + $0x8] sm:$0xff]
    %v323 = vld [vmem:[#allocation7 + $0x10] sm:$0xff]
    %v324 = vld [vmem:[#allocation7 + $0x18] sm:$0xff]
    %s325 = scalar_lea.vmem [#allocation8], 256
    %v326 = vld [vmem:[%s325] sm:$0xff]
    %v327 = vld [vmem:[%s325 + $0x8] sm:$0xff]
    %v328 = vld [vmem:[%s325 + $0x10] sm:$0xff]
    %v329 = vld [vmem:[%s325 + $0x18] sm:$0xff]
    %v330 = vld [vmem:[%s325 + $0x20] sm:$0xff]
    %v331 = vld [vmem:[%s325 + $0x28] sm:$0xff]
    %v332 = vld [vmem:[%s325 + $0x30] sm:$0xff]
    %v333 = vld [vmem:[%s325 + $0x38] sm:$0xff]
    %v334 = vld [vmem:[%s325 + $0x40] sm:$0xff]
    %v335 = vld [vmem:[%s325 + $0x48] sm:$0xff]
    %v336 = vld [vmem:[%s325 + $0x50] sm:$0xff]
    %v337 = vld [vmem:[%s325 + $0x58] sm:$0xff]
    %v338 = vld [vmem:[%s325 + $0x60] sm:$0xff]
    %v339 = vld [vmem:[%s325 + $0x68] sm:$0xff]
    %v340 = vld [vmem:[%s325 + $0x70] sm:$0xff]
    %v341 = vld [vmem:[%s325 + $0x78] sm:$0xff]
    %s342 = scalar_lea.vmem %s4, 2
    %v343 = vld [vmem:[%s342] sm:$0x1]
    %v345 = vlaneseq
    %v346 = vshrl.u32 %v345, 7
    %v347 = vsub.s32 0, %v346
    %v348 = vrot.slane %v343, %v347
    %350 = vmatprep.subr.mxu0 0.0
    %351 = vmatpush1.msra.mxu0 %v326
    %352 = vmatprep.subr.mxu0 0.0
    %353 = vmatpush1.msra.mxu0 %v327
    %354 = vmatprep.subr.mxu0 0.0
    %355 = vmatpush1.msra.mxu0 %v328
    %356 = vmatprep.subr.mxu0 0.0
    %357 = vmatpush1.msra.mxu0 %v329
    %358 = vmatprep.subr.mxu0 0.0
    %359 = vmatpush1.msra.mxu0 %v330
    %360 = vmatprep.subr.mxu0 0.0
    %361 = vmatpush1.msra.mxu0 %v331
    %362 = vmatprep.subr.mxu0 0.0
    %363 = vmatpush1.msra.mxu0 %v332
    %364 = vmatprep.subr.mxu0 0.0
    %365 = vmatpush1.msra.mxu0 %v333
    %366 = vmatprep.subr.mxu0 0.0
    %367 = vmatpush1.msra.mxu0 %v334
    %368 = vmatprep.subr.mxu0 0.0
    %369 = vmatpush1.msra.mxu0 %v335
    %370 = vmatprep.subr.mxu0 0.0
    %371 = vmatpush1.msra.mxu0 %v336
    %372 = vmatprep.subr.mxu0 0.0
    %373 = vmatpush1.msra.mxu0 %v337
    %374 = vmatprep.subr.mxu0 0.0
    %375 = vmatpush1.msra.mxu0 %v338
    %376 = vmatprep.subr.mxu0 0.0
    %377 = vmatpush1.msra.mxu0 %v339
    %378 = vmatprep.subr.mxu0 0.0
    %379 = vmatpush1.msra.mxu0 %v340
    %380 = vmatprep.subr.mxu0 0.0
    %381 = vmatpush1.msra.mxu0 %v341
    %382 = vmatprep.subr.mxu0 0.0
    %383 = vmatpush1.msra.mxu0 0.0
    %384 = vmatprep.subr.mxu0 0.0
    %385 = vmatpush1.msra.mxu0 0.0
    %386 = vmatprep.subr.mxu0 0.0
    %387 = vmatpush1.msra.mxu0 0.0
    %388 = vmatprep.subr.mxu0 0.0
    %389 = vmatpush1.msra.mxu0 0.0
    %390 = vmatprep.subr.mxu0 0.0
    %391 = vmatpush1.msra.mxu0 0.0
    %392 = vmatprep.subr.mxu0 0.0
    %393 = vmatpush1.msra.mxu0 0.0
    %394 = vmatprep.subr.mxu0 0.0
    %395 = vmatpush1.msra.mxu0 0.0
    %396 = vmatprep.subr.mxu0 0.0
    %397 = vmatpush1.msra.mxu0 0.0
    %398 = vmatprep.subr.mxu0 0.0
    %399 = vmatpush1.msra.mxu0 0.0
    %400 = vmatprep.subr.mxu0 0.0
    %401 = vmatpush1.msra.mxu0 0.0
    %402 = vmatprep.subr.mxu0 0.0
    %403 = vmatpush1.msra.mxu0 0.0
    %404 = vmatprep.subr.mxu0 0.0
    %405 = vmatpush1.msra.mxu0 0.0
    %406 = vmatprep.subr.mxu0 0.0
    %407 = vmatpush1.msra.mxu0 0.0
    %408 = vmatprep.subr.mxu0 0.0
    %409 = vmatpush1.msra.mxu0 0.0
    %410 = vmatprep.subr.mxu0 0.0
    %411 = vmatpush1.msra.mxu0 0.0
    %412 = vmatprep.subr.mxu0 0.0
    %413 = vmatpush1.msra.mxu0 0.0
    %414 = vmatprep.mubr.f32.mxu0 0.0
    %415 = vmatmul.mubr.f32.gmra.mrb[0].mxu0 %v321
    %v416 = vpop.f32.mrb[0].mxu0
    %v417 = vadd.f32 %v348, %v416
    %v418 = vpop.f32.mrb[0].mxu0
    %419 = vmatprep.mubr.f32.mxu0 0.0
    %420 = vmatmul.mubr.f32.gmra.mrb[0].mxu0 %v322
    %v421 = vpop.f32.mrb[0].mxu0
    %v422 = vadd.f32 %v348, %v421
    %v423 = vpop.f32.mrb[0].mxu0
    %424 = vmatprep.mubr.f32.mxu0 0.0
    %425 = vmatmul.mubr.f32.gmra.mrb[0].mxu0 %v323
    %v426 = vpop.f32.mrb[0].mxu0
    %v427 = vadd.f32 %v348, %v426
    %v428 = vpop.f32.mrb[0].mxu0
    %429 = vmatprep.mubr.f32.mxu0 0.0
    %430 = vmatmul.mubr.f32.gmra.mrb[0].mxu0 %v324
    %v431 = vpop.f32.mrb[0].mxu0
    %v432 = vadd.f32 %v348, %v431
    %v433 = vpop.f32.mrb[0].mxu0
    %434 = vdwg.mxu0
    %435 = vmatprep.subr.mxu0 0.0
    %436 = vmatpush1.xpose.msra.mxu0 %v303
    %437 = vmatprep.subr.mxu0 0.0
    %438 = vmatpush1.xpose.msra.mxu0 %v308
    %439 = vmatprep.subr.mxu0 0.0
    %440 = vmatpush1.xpose.msra.mxu0 0.0
    %441 = vmatprep.subr.mxu0 0.0
    %442 = vmatpush1.xpose.msra.mxu0 0.0
    %443 = vmatprep.subr.mxu0 0.0
    %444 = vmatpush1.xpose.msra.mxu0 0.0
    %445 = vmatprep.subr.mxu0 0.0
    %446 = vmatpush1.xpose.msra.mxu0 0.0
    %447 = vmatprep.subr.mxu0 0.0
    %448 = vmatpush1.xpose.msra.mxu0 0.0
    %449 = vmatprep.subr.mxu0 0.0
    %450 = vmatpush1.xpose.msra.mxu0 0.0
    %451 = vmatprep.subr.mxu0 0.0
    %452 = vmatpush1.xpose.msra.mxu0 0.0
    %453 = vmatprep.subr.mxu0 0.0
    %454 = vmatpush1.xpose.msra.mxu0 0.0
    %455 = vmatprep.subr.mxu0 0.0
    %456 = vmatpush1.xpose.msra.mxu0 0.0
    %457 = vmatprep.subr.mxu0 0.0
    %458 = vmatpush1.xpose.msra.mxu0 0.0
    %459 = vmatprep.subr.mxu0 0.0
    %460 = vmatpush1.xpose.msra.mxu0 0.0
    %461 = vmatprep.subr.mxu0 0.0
    %462 = vmatpush1.xpose.msra.mxu0 0.0
    %463 = vmatprep.subr.mxu0 0.0
    %464 = vmatpush1.xpose.msra.mxu0 0.0
    %465 = vmatprep.subr.mxu0 0.0
    %466 = vmatpush1.xpose.msra.mxu0 0.0
    %467 = vmatprep.subr.mxu0 0.0
    %468 = vmatpush1.xpose.msra.mxu0 0.0
    %469 = vmatprep.subr.mxu0 0.0
    %470 = vmatpush1.xpose.msra.mxu0 0.0
    %471 = vmatprep.subr.mxu0 0.0
    %472 = vmatpush1.xpose.msra.mxu0 0.0
    %473 = vmatprep.subr.mxu0 0.0
    %474 = vmatpush1.xpose.msra.mxu0 0.0
    %475 = vmatprep.subr.mxu0 0.0
    %476 = vmatpush1.xpose.msra.mxu0 0.0
    %477 = vmatprep.subr.mxu0 0.0
    %478 = vmatpush1.xpose.msra.mxu0 0.0
    %479 = vmatprep.subr.mxu0 0.0
    %480 = vmatpush1.xpose.msra.mxu0 0.0
    %481 = vmatprep.subr.mxu0 0.0
    %482 = vmatpush1.xpose.msra.mxu0 0.0
    %483 = vmatprep.subr.mxu0 0.0
    %484 = vmatpush1.xpose.msra.mxu0 0.0
    %485 = vmatprep.subr.mxu0 0.0
    %486 = vmatpush1.xpose.msra.mxu0 0.0
    %487 = vmatprep.subr.mxu0 0.0
    %488 = vmatpush1.xpose.msra.mxu0 0.0
    %489 = vmatprep.subr.mxu0 0.0
    %490 = vmatpush1.xpose.msra.mxu0 0.0
    %491 = vmatprep.subr.mxu0 0.0
    %492 = vmatpush1.xpose.msra.mxu0 0.0
    %493 = vmatprep.subr.mxu0 0.0
    %494 = vmatpush1.xpose.msra.mxu0 0.0
    %495 = vmatprep.subr.mxu0 0.0
    %496 = vmatpush1.xpose.msra.mxu0 0.0
    %497 = vmatprep.subr.mxu0 0.0
    %498 = vmatpush1.xpose.msra.mxu0 0.0
    %499 = vmatprep.mubr.f32.mxu0 0.0
    %500 = vmatmul.mubr.f32.gmra.mrb[0].mxu0 %v417
    %v501 = vpop.f32.mrb[0].mxu0
    %v502 = vadd.f32 0.0, %v501
    %v503 = vpop.f32.mrb[0].mxu0
    %504 = vmatprep.mubr.f32.mxu0 0.0
    %505 = vmatmul.mubr.f32.gmra.mrb[0].mxu0 %v422
    %v506 = vpop.f32.mrb[0].mxu0
    %v507 = vadd.f32 0.0, %v506
    %v508 = vpop.f32.mrb[0].mxu0
    %509 = vdwg.mxu0
    %510 = vmatprep.subr.mxu0 0.0
    %511 = vmatpush1.xpose.msra.mxu0 %v313
    %512 = vmatprep.subr.mxu0 0.0
    %513 = vmatpush1.xpose.msra.mxu0 %v318
    %514 = vmatprep.subr.mxu0 0.0
    %515 = vmatpush1.xpose.msra.mxu0 0.0
    %516 = vmatprep.subr.mxu0 0.0
    %517 = vmatpush1.xpose.msra.mxu0 0.0
    %518 = vmatprep.subr.mxu0 0.0
    %519 = vmatpush1.xpose.msra.mxu0 0.0
    %520 = vmatprep.subr.mxu0 0.0
    %521 = vmatpush1.xpose.msra.mxu0 0.0
    %522 = vmatprep.subr.mxu0 0.0
    %523 = vmatpush1.xpose.msra.mxu0 0.0
    %524 = vmatprep.subr.mxu0 0.0
    %525 = vmatpush1.xpose.msra.mxu0 0.0
    %526 = vmatprep.subr.mxu0 0.0
    %527 = vmatpush1.xpose.msra.mxu0 0.0
    %528 = vmatprep.subr.mxu0 0.0
    %529 = vmatpush1.xpose.msra.mxu0 0.0
    %530 = vmatprep.subr.mxu0 0.0
    %531 = vmatpush1.xpose.msra.mxu0 0.0
    %532 = vmatprep.subr.mxu0 0.0
    %533 = vmatpush1.xpose.msra.mxu0 0.0
    %534 = vmatprep.subr.mxu0 0.0
    %535 = vmatpush1.xpose.msra.mxu0 0.0
    %536 = vmatprep.subr.mxu0 0.0
    %537 = vmatpush1.xpose.msra.mxu0 0.0
    %538 = vmatprep.subr.mxu0 0.0
    %539 = vmatpush1.xpose.msra.mxu0 0.0
    %540 = vmatprep.subr.mxu0 0.0
    %541 = vmatpush1.xpose.msra.mxu0 0.0
    %542 = vmatprep.subr.mxu0 0.0
    %543 = vmatpush1.xpose.msra.mxu0 0.0
    %544 = vmatprep.subr.mxu0 0.0
    %545 = vmatpush1.xpose.msra.mxu0 0.0
    %546 = vmatprep.subr.mxu0 0.0
    %547 = vmatpush1.xpose.msra.mxu0 0.0
    %548 = vmatprep.subr.mxu0 0.0
    %549 = vmatpush1.xpose.msra.mxu0 0.0
    %550 = vmatprep.subr.mxu0 0.0
    %551 = vmatpush1.xpose.msra.mxu0 0.0
    %552 = vmatprep.subr.mxu0 0.0
    %553 = vmatpush1.xpose.msra.mxu0 0.0
    %554 = vmatprep.subr.mxu0 0.0
    %555 = vmatpush1.xpose.msra.mxu0 0.0
    %556 = vmatprep.subr.mxu0 0.0
    %557 = vmatpush1.xpose.msra.mxu0 0.0
    %558 = vmatprep.subr.mxu0 0.0
    %559 = vmatpush1.xpose.msra.mxu0 0.0
    %560 = vmatprep.subr.mxu0 0.0
    %561 = vmatpush1.xpose.msra.mxu0 0.0
    %562 = vmatprep.subr.mxu0 0.0
    %563 = vmatpush1.xpose.msra.mxu0 0.0
    %564 = vmatprep.subr.mxu0 0.0
    %565 = vmatpush1.xpose.msra.mxu0 0.0
    %566 = vmatprep.subr.mxu0 0.0
    %567 = vmatpush1.xpose.msra.mxu0 0.0
    %568 = vmatprep.subr.mxu0 0.0
    %569 = vmatpush1.xpose.msra.mxu0 0.0
    %570 = vmatprep.subr.mxu0 0.0
    %571 = vmatpush1.xpose.msra.mxu0 0.0
    %572 = vmatprep.subr.mxu0 0.0
    %573 = vmatpush1.xpose.msra.mxu0 0.0
    %574 = vmatprep.mubr.f32.mxu0 0.0
    %575 = vmatmul.mubr.f32.gmra.mrb[0].mxu0 %v427
    %v576 = vpop.f32.mrb[0].mxu0
    %v577 = vadd.f32 0.0, %v576
    %v578 = vpop.f32.mrb[0].mxu0
    %579 = vmatprep.mubr.f32.mxu0 0.0
    %580 = vmatmul.mubr.f32.gmra.mrb[0].mxu0 %v432
    %v581 = vpop.f32.mrb[0].mxu0
    %v582 = vadd.f32 0.0, %v581
    %v583 = vpop.f32.mrb[0].mxu0
    %584 = vdwg.mxu0
    %vm585 = vcmask 130048
    %v586 = vsel %vm585, %v502, -inf
    %587 = vmax.xlane.f32.xlu0 %v586
    %v588 = vpop.xlane.xlu0 %587
    %v589 = vsel %vm585, %v507, -inf
    %590 = vmax.xlane.f32.xlu0 %v589
    %v591 = vpop.xlane.xlu0 %590
    %v592 = vsel %vm585, %v577, -inf
    %593 = vmax.xlane.f32.xlu0 %v592
    %v594 = vpop.xlane.xlu0 %593
    %v595 = vsel %vm585, %v582, -inf
    %596 = vmax.xlane.f32.xlu0 %v595
    %v597 = vpop.xlane.xlu0 %596
    %v598 = vsub.f32 %v502, %v588
    %v599 = vsub.f32 %v507, %v591
    %v600 = vsub.f32 %v577, %v594
    %v601 = vsub.f32 %v582, %v597
    %v602 = vmul.f32 %v598, 1.442695
    %v603 = vpow.pop %v602
    %v604 = vmul.f32 %v599, 1.442695
    %v605 = vpow.pop %v604
    %v606 = vmul.f32 %v600, 1.442695
    %v607 = vpow.pop %v606
    %v608 = vmul.f32 %v601, 1.442695
    %v609 = vpow.pop %v608
    %v610 = vsel %vm585, %v603, 0.0
    %611 = vadd.xlane.f32.xlu0 %v610
    %v612 = vpop.xlane.xlu0 %611
    %v613 = vsel %vm585, %v605, 0.0
    %614 = vadd.xlane.f32.xlu0 %v613
    %v615 = vpop.xlane.xlu0 %614
    %v616 = vsel %vm585, %v607, 0.0
    %617 = vadd.xlane.f32.xlu0 %v616
    %v618 = vpop.xlane.xlu0 %617
    %v619 = vsel %vm585, %v609, 0.0
    %620 = vadd.xlane.f32.xlu0 %v619
    %v621 = vpop.xlane.xlu0 %620
    %v622 = vrcp.pop %v612
    %v623 = vrcp.pop %v615
    %v624 = vrcp.pop %v618
    %v625 = vrcp.pop %v621
    %v626 = vmul.f32 %v603, %v622
    %v627 = vmul.f32 %v605, %v623
    %v628 = vmul.f32 %v607, %v624
    %v629 = vmul.f32 %v609, %v625
    %v631 = vsel %vm585, %v626, 0
    %v634 = vsel %vm585, %v627, 0
    %636 = vmatprep.subr.mxu0 0.0
    %637 = vmatpush1.msra.mxu0 %v189
    %638 = vmatprep.subr.mxu0 0.0
    %639 = vmatpush1.msra.mxu0 %v194
    %640 = vmatprep.subr.mxu0 0.0
    %641 = vmatpush1.msra.mxu0 0.0
    %642 = vmatprep.subr.mxu0 0.0
    %643 = vmatpush1.msra.mxu0 0.0
    %644 = vmatprep.subr.mxu0 0.0
    %645 = vmatpush1.msra.mxu0 0.0
    %646 = vmatprep.subr.mxu0 0.0
    %647 = vmatpush1.msra.mxu0 0.0
    %648 = vmatprep.subr.mxu0 0.0
    %649 = vmatpush1.msra.mxu0 0.0
    %650 = vmatprep.subr.mxu0 0.0
    %651 = vmatpush1.msra.mxu0 0.0
    %652 = vmatprep.subr.mxu0 0.0
    %653 = vmatpush1.msra.mxu0 0.0
    %654 = vmatprep.subr.mxu0 0.0
    %655 = vmatpush1.msra.mxu0 0.0
    %656 = vmatprep.subr.mxu0 0.0
    %657 = vmatpush1.msra.mxu0 0.0
    %658 = vmatprep.subr.mxu0 0.0
    %659 = vmatpush1.msra.mxu0 0.0
    %660 = vmatprep.subr.mxu0 0.0
    %661 = vmatpush1.msra.mxu0 0.0
    %662 = vmatprep.subr.mxu0 0.0
    %663 = vmatpush1.msra.mxu0 0.0
    %664 = vmatprep.subr.mxu0 0.0
    %665 = vmatpush1.msra.mxu0 0.0
    %666 = vmatprep.subr.mxu0 0.0
    %667 = vmatpush1.msra.mxu0 0.0
    %668 = vmatprep.subr.mxu0 0.0
    %669 = vmatpush1.msra.mxu0 0.0
    %670 = vmatprep.subr.mxu0 0.0
    %671 = vmatpush1.msra.mxu0 0.0
    %672 = vmatprep.subr.mxu0 0.0
    %673 = vmatpush1.msra.mxu0 0.0
    %674 = vmatprep.subr.mxu0 0.0
    %675 = vmatpush1.msra.mxu0 0.0
    %676 = vmatprep.subr.mxu0 0.0
    %677 = vmatpush1.msra.mxu0 0.0
    %678 = vmatprep.subr.mxu0 0.0
    %679 = vmatpush1.msra.mxu0 0.0
    %680 = vmatprep.subr.mxu0 0.0
    %681 = vmatpush1.msra.mxu0 0.0
    %682 = vmatprep.subr.mxu0 0.0
    %683 = vmatpush1.msra.mxu0 0.0
    %684 = vmatprep.subr.mxu0 0.0
    %685 = vmatpush1.msra.mxu0 0.0
    %686 = vmatprep.subr.mxu0 0.0
    %687 = vmatpush1.msra.mxu0 0.0
    %688 = vmatprep.subr.mxu0 0.0
    %689 = vmatpush1.msra.mxu0 0.0
    %690 = vmatprep.subr.mxu0 0.0
    %691 = vmatpush1.msra.mxu0 0.0
    %692 = vmatprep.subr.mxu0 0.0
    %693 = vmatpush1.msra.mxu0 0.0
    %694 = vmatprep.subr.mxu0 0.0
    %695 = vmatpush1.msra.mxu0 0.0
    %696 = vmatprep.subr.mxu0 0.0
    %697 = vmatpush1.msra.mxu0 0.0
    %698 = vmatprep.subr.mxu0 0.0
    %699 = vmatpush1.msra.mxu0 0.0
    %700 = vmatprep.mubr.f32.mxu0 0.0
    %701 = vmatmul.mubr.f32.gmra.mrb[0].mxu0 %v631
    %v702 = vpop.f32.mrb[0].mxu0
    %v703 = vadd.f32 0.0, %v702
    %v704 = vpop.f32.mrb[0].mxu0
    %705 = vmatprep.mubr.f32.mxu0 0.0
    %706 = vmatmul.mubr.f32.gmra.mrb[0].mxu0 %v634
    %v707 = vpop.f32.mrb[0].mxu0
    %v708 = vadd.f32 0.0, %v707
    %v709 = vpop.f32.mrb[0].mxu0
    %710 = vdwg.mxu0
    %v712 = vsel %vm585, %v628, 0
    %v715 = vsel %vm585, %v629, 0
    %717 = vmatprep.subr.mxu0 0.0
    %718 = vmatpush1.msra.mxu0 %v199
    %719 = vmatprep.subr.mxu0 0.0
    %720 = vmatpush1.msra.mxu0 %v204
    %721 = vmatprep.subr.mxu0 0.0
    %722 = vmatpush1.msra.mxu0 0.0
    %723 = vmatprep.subr.mxu0 0.0
    %724 = vmatpush1.msra.mxu0 0.0
    %725 = vmatprep.subr.mxu0 0.0
    %726 = vmatpush1.msra.mxu0 0.0
    %727 = vmatprep.subr.mxu0 0.0
    %728 = vmatpush1.msra.mxu0 0.0
    %729 = vmatprep.subr.mxu0 0.0
    %730 = vmatpush1.msra.mxu0 0.0
    %731 = vmatprep.subr.mxu0 0.0
    %732 = vmatpush1.msra.mxu0 0.0
    %733 = vmatprep.subr.mxu0 0.0
    %734 = vmatpush1.msra.mxu0 0.0
    %735 = vmatprep.subr.mxu0 0.0
    %736 = vmatpush1.msra.mxu0 0.0
    %737 = vmatprep.subr.mxu0 0.0
    %738 = vmatpush1.msra.mxu0 0.0
    %739 = vmatprep.subr.mxu0 0.0
    %740 = vmatpush1.msra.mxu0 0.0
    %741 = vmatprep.subr.mxu0 0.0
    %742 = vmatpush1.msra.mxu0 0.0
    %743 = vmatprep.subr.mxu0 0.0
    %744 = vmatpush1.msra.mxu0 0.0
    %745 = vmatprep.subr.mxu0 0.0
    %746 = vmatpush1.msra.mxu0 0.0
    %747 = vmatprep.subr.mxu0 0.0
    %748 = vmatpush1.msra.mxu0 0.0
    %749 = vmatprep.subr.mxu0 0.0
    %750 = vmatpush1.msra.mxu0 0.0
    %751 = vmatprep.subr.mxu0 0.0
    %752 = vmatpush1.msra.mxu0 0.0
    %753 = vmatprep.subr.mxu0 0.0
    %754 = vmatpush1.msra.mxu0 0.0
    %755 = vmatprep.subr.mxu0 0.0
    %756 = vmatpush1.msra.mxu0 0.0
    %757 = vmatprep.subr.mxu0 0.0
    %758 = vmatpush1.msra.mxu0 0.0
    %759 = vmatprep.subr.mxu0 0.0
    %760 = vmatpush1.msra.mxu0 0.0
    %761 = vmatprep.subr.mxu0 0.0
    %762 = vmatpush1.msra.mxu0 0.0
    %763 = vmatprep.subr.mxu0 0.0
    %764 = vmatpush1.msra.mxu0 0.0
    %765 = vmatprep.subr.mxu0 0.0
    %766 = vmatpush1.msra.mxu0 0.0
    %767 = vmatprep.subr.mxu0 0.0
    %768 = vmatpush1.msra.mxu0 0.0
    %769 = vmatprep.subr.mxu0 0.0
    %770 = vmatpush1.msra.mxu0 0.0
    %771 = vmatprep.subr.mxu0 0.0
    %772 = vmatpush1.msra.mxu0 0.0
    %773 = vmatprep.subr.mxu0 0.0
    %774 = vmatpush1.msra.mxu0 0.0
    %775 = vmatprep.subr.mxu0 0.0
    %776 = vmatpush1.msra.mxu0 0.0
    %777 = vmatprep.subr.mxu0 0.0
    %778 = vmatpush1.msra.mxu0 0.0
    %779 = vmatprep.subr.mxu0 0.0
    %780 = vmatpush1.msra.mxu0 0.0
    %781 = vmatprep.mubr.f32.mxu0 0.0
    %782 = vmatmul.mubr.f32.gmra.mrb[0].mxu0 %v712
    %v783 = vpop.f32.mrb[0].mxu0
    %v784 = vadd.f32 0.0, %v783
    %v785 = vpop.f32.mrb[0].mxu0
    %786 = vmatprep.mubr.f32.mxu0 0.0
    %787 = vmatmul.mubr.f32.gmra.mrb[0].mxu0 %v715
    %v788 = vpop.f32.mrb[0].mxu0
    %v789 = vadd.f32 0.0, %v788
    %v790 = vpop.f32.mrb[0].mxu0
    %791 = vdwg.mxu0
    %v792 = vld [vmem:[#allocation10] sm:$0xff]
    %v793 = vld [vmem:[#allocation10 + $0x8] sm:$0xff]
    %v794 = vld [vmem:[#allocation10 + $0x10] sm:$0xff]
    %v795 = vld [vmem:[#allocation10 + $0x18] sm:$0xff]
    %v796 = vld [vmem:[#allocation10 + $0x20] sm:$0xff]
    %v797 = vld [vmem:[#allocation10 + $0x28] sm:$0xff]
    %v798 = vld [vmem:[#allocation10 + $0x30] sm:$0xff]
    %v799 = vld [vmem:[#allocation10 + $0x38] sm:$0xff]
    %v800 = vld [vmem:[#allocation10 + $0x40] sm:$0xff]
    %v801 = vld [vmem:[#allocation10 + $0x48] sm:$0xff]
    %v802 = vld [vmem:[#allocation10 + $0x50] sm:$0xff]
    %v803 = vld [vmem:[#allocation10 + $0x58] sm:$0xff]
    %v804 = vld [vmem:[#allocation10 + $0x60] sm:$0xff]
    %v805 = vld [vmem:[#allocation10 + $0x68] sm:$0xff]
    %v806 = vld [vmem:[#allocation10 + $0x70] sm:$0xff]
    %v807 = vld [vmem:[#allocation10 + $0x78] sm:$0xff]
    %v808 = vld [vmem:[%s6] sm:$0x1]
    %v810 = vlaneseq
    %v811 = vshrl.u32 %v810, 7
    %v812 = vsub.s32 0, %v811
    %v813 = vrot.slane %v808, %v812
    %815 = vmatprep.subr.mxu0 0.0
    %816 = vmatpush1.msra.mxu0 %v792
    %817 = vmatprep.subr.mxu0 0.0
    %818 = vmatpush1.msra.mxu0 %v793
    %819 = vmatprep.subr.mxu0 0.0
    %820 = vmatpush1.msra.mxu0 %v794
    %821 = vmatprep.subr.mxu0 0.0
    %822 = vmatpush1.msra.mxu0 %v795
    %823 = vmatprep.subr.mxu0 0.0
    %824 = vmatpush1.msra.mxu0 %v796
    %825 = vmatprep.subr.mxu0 0.0
    %826 = vmatpush1.msra.mxu0 %v797
    %827 = vmatprep.subr.mxu0 0.0
    %828 = vmatpush1.msra.mxu0 %v798
    %829 = vmatprep.subr.mxu0 0.0
    %830 = vmatpush1.msra.mxu0 %v799
    %831 = vmatprep.subr.mxu0 0.0
    %832 = vmatpush1.msra.mxu0 %v800
    %833 = vmatprep.subr.mxu0 0.0
    %834 = vmatpush1.msra.mxu0 %v801
    %835 = vmatprep.subr.mxu0 0.0
    %836 = vmatpush1.msra.mxu0 %v802
    %837 = vmatprep.subr.mxu0 0.0
    %838 = vmatpush1.msra.mxu0 %v803
    %839 = vmatprep.subr.mxu0 0.0
    %840 = vmatpush1.msra.mxu0 %v804
    %841 = vmatprep.subr.mxu0 0.0
    %842 = vmatpush1.msra.mxu0 %v805
    %843 = vmatprep.subr.mxu0 0.0
    %844 = vmatpush1.msra.mxu0 %v806
    %845 = vmatprep.subr.mxu0 0.0
    %846 = vmatpush1.msra.mxu0 %v807
    %847 = vmatprep.subr.mxu0 0.0
    %848 = vmatpush1.msra.mxu0 0.0
    %849 = vmatprep.subr.mxu0 0.0
    %850 = vmatpush1.msra.mxu0 0.0
    %851 = vmatprep.subr.mxu0 0.0
    %852 = vmatpush1.msra.mxu0 0.0
    %853 = vmatprep.subr.mxu0 0.0
    %854 = vmatpush1.msra.mxu0 0.0
    %855 = vmatprep.subr.mxu0 0.0
    %856 = vmatpush1.msra.mxu0 0.0
    %857 = vmatprep.subr.mxu0 0.0
    %858 = vmatpush1.msra.mxu0 0.0
    %859 = vmatprep.subr.mxu0 0.0
    %860 = vmatpush1.msra.mxu0 0.0
    %861 = vmatprep.subr.mxu0 0.0
    %862 = vmatpush1.msra.mxu0 0.0
    %863 = vmatprep.subr.mxu0 0.0
    %864 = vmatpush1.msra.mxu0 0.0
    %865 = vmatprep.subr.mxu0 0.0
    %866 = vmatpush1.msra.mxu0 0.0
    %867 = vmatprep.subr.mxu0 0.0
    %868 = vmatpush1.msra.mxu0 0.0
    %869 = vmatprep.subr.mxu0 0.0
    %870 = vmatpush1.msra.mxu0 0.0
    %871 = vmatprep.subr.mxu0 0.0
    %872 = vmatpush1.msra.mxu0 0.0
    %873 = vmatprep.subr.mxu0 0.0
    %874 = vmatpush1.msra.mxu0 0.0
    %875 = vmatprep.subr.mxu0 0.0
    %876 = vmatpush1.msra.mxu0 0.0
    %877 = vmatprep.subr.mxu0 0.0
    %878 = vmatpush1.msra.mxu0 0.0
    %879 = vmatprep.mubr.f32.mxu0 0.0
    %880 = vmatmul.mubr.f32.gmra.mrb[0].mxu0 %v703
    %v881 = vpop.f32.mrb[0].mxu0
    %v882 = vadd.f32 %v813, %v881
    %v883 = vpop.f32.mrb[0].mxu0
    %884 = vmatprep.mubr.f32.mxu0 0.0
    %885 = vmatmul.mubr.f32.gmra.mrb[0].mxu0 %v708
    %v886 = vpop.f32.mrb[0].mxu0
    %v887 = vadd.f32 %v813, %v886
    %v888 = vpop.f32.mrb[0].mxu0
    %889 = vmatprep.mubr.f32.mxu0 0.0
    %890 = vmatmul.mubr.f32.gmra.mrb[0].mxu0 %v784
    %v891 = vpop.f32.mrb[0].mxu0
    %v892 = vadd.f32 %v813, %v891
    %v893 = vpop.f32.mrb[0].mxu0
    %894 = vmatprep.mubr.f32.mxu0 0.0
    %895 = vmatmul.mubr.f32.gmra.mrb[0].mxu0 %v789
    %v896 = vpop.f32.mrb[0].mxu0
    %v897 = vadd.f32 %v813, %v896
    %v898 = vpop.f32.mrb[0].mxu0
    %899 = vdwg.mxu0
    %900 = vst [vmem:[#allocation11] sm:$0xff] %v882
    %901 = vst [vmem:[#allocation11 + $0x8] sm:$0xff] %v887
    %902 = vst [vmem:[#allocation11 + $0x10] sm:$0xff] %v892
    %903 = vst [vmem:[#allocation11 + $0x18] sm:$0xff] %v897
    // Predicated region
    $region50: #{tpu_custom_call.1} parent=1 // pred_check
      _
    $region51: #{tpu_custom_call.1} parent=1 // pred_check_branch
      %905 = sbr.rel (0) target = $region53
    $region52: #{tpu_custom_call.1} parent=1 // pred_region
      %s907 = ssub.s32 512, 512
      %908 = vsyncadd [#allocation4], %s907
      %s909 = sshll.u32 [#allocation11], 4
      %s910 = int_to_ptr.vmem [resolvable:$true] %s909
      %915 = dma.vmem_to_hbm [thread:$0]  %s910, 512, %s7, [#allocation4], 128, 128, 8
    $region53: #{tpu_custom_call.1} parent=1 // pred_fallthru
      _
    // Predicated region
    $region54: #{tpu_custom_call.1} parent=1 // pred_check
      _
    $region55: #{tpu_custom_call.1} parent=1 // pred_check_branch
      %917 = sbr.rel (0) target = $region57
    $region56: #{tpu_custom_call.1} parent=1 // pred_region
      %918 = dma.done [#allocation4], 512
    $region57: #{tpu_custom_call.1} parent=1 // pred_fallthru
      _
    %919 = vsyncpa [#allocation3], 1
    %920 = vsyncpa [#allocation6], 1
    %921 = vsyncpa [#allocation9], 1
    %922 = vsyncpa [#allocation4], 1

</llo_original>
